<compile_context>
chip_gen: v5e
topology: v5e:2x2
jax: 0.10.0
libtpu: 0.0.40
codegen_flags: <defaults>
</compile_context>

<pallas_src>
import functools
import math

import jax
import jax.numpy as jnp
from jax.experimental import pallas as pl
from jax.experimental.pallas import tpu as pltpu

NEG_INF = -1e9


def _round_up(x, m):
    return (x + m - 1) // m * m


def _pick_tile(dim, align, max_tile):
    """Largest `align`-multiple tile <= max_tile dividing round_up(dim, align)."""
    dp = _round_up(dim, align)
    if dp <= max_tile:
        return dp
    best = align
    t = align
    while t <= max_tile:
        if dp % t == 0:
            best = t
        t += align
    return best


def _pad2(a, rows, cols):
    r, c = a.shape
    if r == rows and c == cols:
        return a
    return jnp.pad(a, ((0, rows - r), (0, cols - c)))


# ----------------------------------------------------------------------------
# GELU (tanh approximation, computed in f32 inside kernels)
# ----------------------------------------------------------------------------
def _gelu(x):
    # TODO(synk): HF BertForMaskedLM default is erf-GELU; tanh approx drifts ~1e-3.
    c = 0.7978845608028654  # sqrt(2/pi), Python float -> jaxpr literal
    return 0.5 * x * (1.0 + jnp.tanh(c * (x + 0.044715 * x * x * x)))


# ----------------------------------------------------------------------------
# Tiled linear: o = act(x @ w + b)   (QKV, FFN1, final label projection)
# ----------------------------------------------------------------------------
def _linear_kernel(x_ref, w_ref, b_ref, o_ref, acc_ref, *, act):
    @pl.when(pl.program_id(2) == 0)
    def _():
        acc_ref[...] = jnp.zeros_like(acc_ref)

    acc_ref[...] += jnp.dot(x_ref[...], w_ref[...],
                            preferred_element_type=jnp.float32)

    @pl.when(pl.program_id(2) == pl.num_programs(2) - 1)
    def _():
        y = acc_ref[...] + b_ref[...]          # f32 epilogue
        if act == "gelu":
            y = _gelu(y)
        o_ref[...] = y.astype(o_ref.dtype)


def linear(x, w, b, act="none", out_dtype=jnp.bfloat16,
           tm_max=256, tn_max=512, tk_max=768):
    """o = act(x @ w + b); x:[M,K], w:[K,N], b:[N] -> [M,N]."""
    M, K = x.shape
    _, N = w.shape
    tm = _pick_tile(M, 8, tm_max)
    tn = _pick_tile(N, 128, tn_max)
    tk = _pick_tile(K, 128, tk_max)       # full-K (collapsed k axis) when it fits
    Mp, Np, Kp = _round_up(M, tm), _round_up(N, tn), _round_up(K, tk)

    xp = _pad2(x.astype(jnp.bfloat16), Mp, Kp)
    wp = _pad2(w.astype(jnp.bfloat16), Kp, Np)     # no-op for pre-cast, aligned w
    bp = _pad2(b.astype(jnp.float32).reshape(1, N), 1, Np)

    out = pl.pallas_call(
        functools.partial(_linear_kernel, act=act),
        out_shape=jax.ShapeDtypeStruct((Mp, Np), out_dtype),
        grid=(Mp // tm, Np // tn, Kp // tk),
        in_specs=[
            pl.BlockSpec((tm, tk), lambda i, j, k: (i, k)),
            pl.BlockSpec((tk, tn), lambda i, j, k: (k, j)),
            pl.BlockSpec((1, tn), lambda i, j, k: (0, j)),
        ],
        out_specs=pl.BlockSpec((tm, tn), lambda i, j, k: (i, j)),
        scratch_shapes=[pltpu.VMEM((tm, tn), jnp.float32)],
        compiler_params=pltpu.CompilerParams(
            dimension_semantics=("parallel", "parallel", "arbitrary")),
    )(xp, wp, bp)
    if Mp != M or Np != N:
        out = out[:M, :N]
    return out


# ----------------------------------------------------------------------------
# Fused linear + bias (+ GELU) (+ residual) + LayerNorm epilogue.
# N is kept whole (one lane-dense output tile per row block) so the LN
# reduction over the hidden dim happens entirely inside the GEMM epilogue.
# ----------------------------------------------------------------------------
def _linear_ln_kernel(x_ref, w_ref, b_ref, g_ref, bt_ref, o_ref, acc_ref,
                      *, act, eps):
    @pl.when(pl.program_id(1) == 0)
    def _():
        acc_ref[...] = jnp.zeros_like(acc_ref)

    acc_ref[...] += jnp.dot(x_ref[...], w_ref[...],
                            preferred_element_type=jnp.float32)

    @pl.when(pl.program_id(1) == pl.num_programs(1) - 1)
    def _():
        h = acc_ref[...] + b_ref[...]
        if act == "gelu":
            h = _gelu(h)
        mu = jnp.mean(h, axis=-1, keepdims=True)
        d = h - mu
        var = jnp.mean(d * d, axis=-1, keepdims=True)
        inv = jax.lax.rsqrt(var + eps)
        o_ref[...] = (d * inv * g_ref[...] + bt_ref[...]).astype(o_ref.dtype)


def _linear_ln_res_kernel(x_ref, w_ref, b_ref, r_ref, g_ref, bt_ref, o_ref,
                          acc_ref, *, eps):
    @pl.when(pl.program_id(1) == 0)
    def _():
        acc_ref[...] = jnp.zeros_like(acc_ref)

    acc_ref[...] += jnp.dot(x_ref[...], w_ref[...],
                            preferred_element_type=jnp.float32)

    @pl.when(pl.program_id(1) == pl.num_programs(1) - 1)
    def _():
        h = acc_ref[...] + b_ref[...] + r_ref[...].astype(jnp.float32)
        mu = jnp.mean(h, axis=-1, keepdims=True)
        d = h - mu
        var = jnp.mean(d * d, axis=-1, keepdims=True)
        inv = jax.lax.rsqrt(var + eps)
        o_ref[...] = (d * inv * g_ref[...] + bt_ref[...]).astype(o_ref.dtype)


def linear_ln(x, w, b, gamma, beta, residual=None, act="none", eps=1e-12,
              out_dtype=jnp.bfloat16, tm_max=256, tk_max=768):
    """LayerNorm(act(x @ w + b) [+ residual]); x:[M,K], w:[K,N] -> [M,N]."""
    M, K = x.shape
    _, N = w.shape
    tm = _pick_tile(M, 8, tm_max)
    tk = _pick_tile(K, 128, tk_max)
    Mp, Kp = _round_up(M, tm), _round_up(K, tk)

    xp = _pad2(x.astype(jnp.bfloat16), Mp, Kp)
    wp = _pad2(w.astype(jnp.bfloat16), Kp, N)
    bp = b.astype(jnp.float32).reshape(1, N)
    gp = gamma.astype(jnp.float32).reshape(1, N)
    btp = beta.astype(jnp.float32).reshape(1, N)

    row_spec = pl.BlockSpec((tm, N), lambda i, k: (i, 0))
    vec_spec = pl.BlockSpec((1, N), lambda i, k: (0, 0))
    in_specs = [
        pl.BlockSpec((tm, tk), lambda i, k: (i, k)),
        pl.BlockSpec((tk, N), lambda i, k: (k, 0)),
        vec_spec,
    ]
    if residual is None:
        kernel = functools.partial(_linear_ln_kernel, act=act, eps=eps)
        args = (xp, wp, bp, gp, btp)
        in_specs += [vec_spec, vec_spec]
    else:
        assert act == "none"
        rp = _pad2(residual.astype(jnp.bfloat16), Mp, N)
        kernel = functools.partial(_linear_ln_res_kernel, eps=eps)
        args = (xp, wp, bp, rp, gp, btp)
        in_specs += [row_spec, vec_spec, vec_spec]

    out = pl.pallas_call(
        kernel,
        out_shape=jax.ShapeDtypeStruct((Mp, N), out_dtype),
        grid=(Mp // tm, Kp // tk),
        in_specs=in_specs,
        out_specs=row_spec,
        scratch_shapes=[pltpu.VMEM((tm, N), jnp.float32)],
        compiler_params=pltpu.CompilerParams(
            dimension_semantics=("parallel", "arbitrary")),
    )(*args)
    if Mp != M:
        out = out[:M]
    return out


# ----------------------------------------------------------------------------
# Standalone LayerNorm (embeddings only), f32 math
# ----------------------------------------------------------------------------
def _ln_kernel(x_ref, g_ref, b_ref, o_ref, *, eps):
    h = x_ref[...].astype(jnp.float32)
    mu = jnp.mean(h, axis=-1, keepdims=True)
    d = h - mu
    var = jnp.mean(d * d, axis=-1, keepdims=True)
    inv = jax.lax.rsqrt(var + eps)
    o_ref[...] = (d * inv * g_ref[...] + b_ref[...]).astype(o_ref.dtype)


def layer_norm(x, gamma, beta, eps=1e-12, out_dtype=jnp.bfloat16, tm_max=512):
    M, H = x.shape
    tm = _pick_tile(M, 8, tm_max)
    Mp = _round_up(M, tm)
    xp = _pad2(x, Mp, H)
    g2 = gamma.astype(jnp.float32).reshape(1, H)
    b2 = beta.astype(jnp.float32).reshape(1, H)

    out = pl.pallas_call(
        functools.partial(_ln_kernel, eps=eps),
        out_shape=jax.ShapeDtypeStruct((Mp, H), out_dtype),
        grid=(Mp // tm,),
        in_specs=[pl.BlockSpec((tm, H), lambda i: (i, 0)),
                  pl.BlockSpec((1, H), lambda i: (0, 0)),
                  pl.BlockSpec((1, H), lambda i: (0, 0))],
        out_specs=pl.BlockSpec((tm, H), lambda i: (i, 0)),
        compiler_params=pltpu.CompilerParams(
            dimension_semantics=("parallel",)),
    )(xp, g2, b2)
    if Mp != M:
        out = out[:M]
    return out


# ----------------------------------------------------------------------------
# Attention: single-pass softmax, all heads of a query tile per grid step,
# [B, S, H] in / out (no split/merge-heads transposes), full-length kv tile,
# non-broadcast [B, 1, S] additive mask, lane-dense [tq, H] output slab.
# ----------------------------------------------------------------------------
def _attn_kernel(q_ref, k_ref, v_ref, mask_ref, o_ref, *, scale, n_heads, dh):
    # q_ref: (1, tq, H)   k_ref/v_ref: (1, Skv, H)   mask_ref: (1, 1, Skv)
    mask = mask_ref[0]                              # (1, Skv) additive, f32
    for h in range(n_heads):                        # static unroll over heads
        lo = h * dh
        q = q_ref[0, :, lo:lo + dh]                 # (tq, dh)  bf16
        k = k_ref[0, :, lo:lo + dh]                 # (Skv, dh) bf16
        v = v_ref[0, :, lo:lo + dh]                 # (Skv, dh) bf16
        s = jax.lax.dot_general(
            q, k, (((1,), (1,)), ((), ())),
            preferred_element_type=jnp.float32) * scale
        s = s + mask                                # broadcast over query rows
        m = jnp.max(s, axis=-1, keepdims=True)
        p = jnp.exp(s - m)
        l = jnp.sum(p, axis=-1, keepdims=True)
        p = (p * pl.reciprocal(l, approx=True)).astype(v.dtype)
        ctx = jnp.dot(p, v, preferred_element_type=jnp.float32)
        # Per-head store lands in the VMEM tile; the HBM writeback is one
        # lane-dense (tq, H) slab per grid step.
        o_ref[0, :, lo:lo + dh] = ctx.astype(o_ref.dtype)


def attention(q, k, v, add_mask, scale, n_heads, tq_max=256):
    """q,k,v: [B, S, H]; add_mask: [B, 1, S] (additive f32) -> [B, S, H]."""
    B, S, H = q.shape
    dh = H // n_heads
    Sp = _round_up(S, 8)
    tq = _pick_tile(S, 8, tq_max)

    def pad_seq(a):
        if a.shape[1] == Sp:
            return a
        return jnp.pad(a, ((0, 0), (0, Sp - a.shape[1]), (0, 0)))

    qp = pad_seq(q).astype(jnp.bfloat16)
    kp = pad_seq(k).astype(jnp.bfloat16)
    vp = pad_seq(v).astype(jnp.bfloat16)
    mp = add_mask.astype(jnp.float32)
    if Sp != S:
        mp = jnp.pad(mp, ((0, 0), (0, 0), (0, Sp - S)),
                     constant_values=NEG_INF)

    out = pl.pallas_call(
        functools.partial(_attn_kernel, scale=scale, n_heads=n_heads, dh=dh),
        out_shape=jax.ShapeDtypeStruct((B, Sp, H), jnp.bfloat16),
        grid=(B, Sp // tq),
        in_specs=[
            pl.BlockSpec((1, tq, H), lambda b, qi: (b, qi, 0)),
            pl.BlockSpec((1, Sp, H), lambda b, qi: (b, 0, 0)),   # full kv tile
            pl.BlockSpec((1, Sp, H), lambda b, qi: (b, 0, 0)),
            pl.BlockSpec((1, 1, Sp), lambda b, qi: (b, 0, 0)),   # [B,1,S] mask
        ],
        out_specs=pl.BlockSpec((1, tq, H), lambda b, qi: (b, qi, 0)),
        compiler_params=pltpu.CompilerParams(
            dimension_semantics=("parallel", "parallel")),
    )(qp, kp, vp, mp)
    if Sp != S:
        out = out[:, :S, :]
    return out


# ----------------------------------------------------------------------------
# Synthetic BertForMaskedLM parameters (deterministic init, fused QKV,
# matmul weights pre-cast to bf16 once).
# ----------------------------------------------------------------------------
def init_params(key, vocab, max_pos, hidden, n_heads, ffn, n_layers):
    def nrm(k, shape, std=0.02, dtype=jnp.float32):
        return (std * jax.random.normal(k, shape)).astype(dtype)

    keys = iter(jax.random.split(key, 8 + 8 * n_layers))
    p = {
        "word_emb": nrm(next(keys), (vocab, hidden)),
        "pos_emb": nrm(next(keys), (max_pos, hidden)),
        "type_emb": nrm(next(keys), (2, hidden)),
        "emb_ln_g": jnp.ones((hidden,), jnp.float32),
        "emb_ln_b": jnp.zeros((hidden,), jnp.float32),
        "layers": [],
        "mlm_dense_w": nrm(next(keys), (hidden, hidden), dtype=jnp.bfloat16),
        "mlm_dense_b": jnp.zeros((hidden,), jnp.float32),
        "mlm_ln_g": jnp.ones((hidden,), jnp.float32),
        "mlm_ln_b": jnp.zeros((hidden,), jnp.float32),
        "decoder_w": nrm(next(keys), (hidden, vocab), dtype=jnp.bfloat16),
        "decoder_b": jnp.zeros((vocab,), jnp.float32),
    }
    for _ in range(n_layers):
        layer = {
            "wqkv": jnp.concatenate(
                [nrm(next(keys), (hidden, hidden), dtype=jnp.bfloat16)
                 for _ in range(3)], axis=1),
            "bqkv": jnp.zeros((3 * hidden,), jnp.float32),
            "wo": nrm(next(keys), (hidden, hidden), dtype=jnp.bfloat16),
            "bo": jnp.zeros((hidden,), jnp.float32),
            "attn_ln_g": jnp.ones((hidden,), jnp.float32),
            "attn_ln_b": jnp.zeros((hidden,), jnp.float32),
            "w_ffn1": nrm(next(keys), (hidden, ffn), dtype=jnp.bfloat16),
            "b_ffn1": jnp.zeros((ffn,), jnp.float32),
            "w_ffn2": nrm(next(keys), (ffn, hidden), dtype=jnp.bfloat16),
            "b_ffn2": jnp.zeros((hidden,), jnp.float32),
            "ffn_ln_g": jnp.ones((hidden,), jnp.float32),
            "ffn_ln_b": jnp.zeros((hidden,), jnp.float32),
        }
        p["layers"].append(layer)
    return p


# ----------------------------------------------------------------------------
# Forward pass == BertPromptModel.forward
# ----------------------------------------------------------------------------
def bert_prompt_forward(params, input_ids, attention_mask, mask_pos,
                        label_word_list, n_heads):
    B, S = input_ids.shape
    H = params["word_emb"].shape[1]
    dh = H // n_heads
    scale = 1.0 / math.sqrt(dh)        # Python float -> safe kernel literal

    mask_pos = mask_pos.reshape(-1)    # == mask_pos.squeeze() in the reference

    # Embeddings (gathers are XLA glue) + LayerNorm (Pallas)
    emb = (jnp.take(params["word_emb"], input_ids, axis=0)
           + params["pos_emb"][:S][None, :, :]
           + params["type_emb"][0][None, None, :])
    x = layer_norm(emb.reshape(B * S, H),
                   params["emb_ln_g"], params["emb_ln_b"])

    # Additive attention mask kept at [B, 1, S] (never broadcast over heads)
    add_mask = ((1.0 - attention_mask.astype(jnp.float32)) * NEG_INF)[:, None, :]

    for lp in params["layers"]:
        qkv = linear(x, lp["wqkv"], lp["bqkv"]).reshape(B, S, 3 * H)
        q, k, v = qkv[..., :H], qkv[..., H:2 * H], qkv[..., 2 * H:]
        ctx = attention(q, k, v, add_mask, scale, n_heads).reshape(B * S, H)
        # Wo projection with fused bias + residual + LayerNorm epilogue
        x = linear_ln(ctx, lp["wo"], lp["bo"],
                      lp["attn_ln_g"], lp["attn_ln_b"], residual=x)
        ffn_h = linear(x, lp["w_ffn1"], lp["b_ffn1"], act="gelu")
        # FFN2 with fused bias + residual + LayerNorm epilogue
        x = linear_ln(ffn_h, lp["w_ffn2"], lp["b_ffn2"],
                      lp["ffn_ln_g"], lp["ffn_ln_b"], residual=x)

    # Prompt head: gather mask-position rows BEFORE the vocab projection and
    # only project onto the label-word columns (same logits as the reference
    # scores[arange(B), mask_pos][:, label_word_list]).
    x3 = x.reshape(B, S, H)
    mask_h = x3[jnp.arange(B), mask_pos]                         # [B, H]
    h = linear_ln(mask_h, params["mlm_dense_w"], params["mlm_dense_b"],
                  params["mlm_ln_g"], params["mlm_ln_b"], act="gelu")
    label_ids = jnp.asarray(label_word_list, dtype=jnp.int32)
    w_lab = jnp.take(params["decoder_w"], label_ids, axis=1)     # [H, n_labels]
    b_lab = jnp.take(params["decoder_b"], label_ids, axis=0)
    logits = linear(h, w_lab, b_lab, out_dtype=jnp.float32)      # [B, n_labels]
    return logits


# ----------------------------------------------------------------------------
# Main
# ----------------------------------------------------------------------------
if __name__ == "__main__":
    # Small synthetic config
    B, S, H, NH, FFN, L, VOCAB = 2, 8, 32, 2, 64, 2, 64
    label_word_list = (5, 17, 42)

    key = jax.random.PRNGKey(0)
    kp, kid = jax.random.split(key)
    params = init_params(kp, VOCAB, 128, H, NH, FFN, L)

    input_ids = jax.random.randint(kid, (B, S), 0, VOCAB, dtype=jnp.int32)
    attention_mask = jnp.ones((B, S), dtype=jnp.int32)
    mask_pos = jnp.array([[1], [3]], dtype=jnp.int32)   # [B, 1], squeezed inside

    fwd = jax.jit(functools.partial(bert_prompt_forward,
                                    label_word_list=label_word_list,
                                    n_heads=NH))
    logits = jax.block_until_ready(
        fwd(params, input_ids, attention_mask, mask_pos))
    assert logits.shape == (B, len(label_word_list))
    assert bool(jnp.all(jnp.isfinite(logits)))
    print("KERNEL_OK")
</pallas_src>

<mosaic_0001>
module attributes {stable_mosaic.version = 11 : i64} {
  func.func @_ln_kernel(%arg0: i32, %arg1: memref<16x32xf32, #tpu.memory_space<vmem>>, %arg2: memref<1x32xf32, #tpu.memory_space<vmem>>, %arg3: memref<1x32xf32, #tpu.memory_space<vmem>>, %arg4: memref<16x32xbf16, #tpu.memory_space<vmem>>) attributes {dimension_semantics = [#tpu.dimension_semantics<parallel>], iteration_bounds = array<i64: 1>, scalar_prefetch = 0 : i64, scratch_operands = 0 : i64, tpu.core_type = #tpu.core_type<tc>, window_params = [{transform_indices = @transform_0, window_bounds = array<i64: 16, 32>}, {pipeline_mode = #tpu.pipeline_mode<synchronous>, transform_indices = @transform_1, window_bounds = array<i64: 1, 32>}, {pipeline_mode = #tpu.pipeline_mode<synchronous>, transform_indices = @transform_2, window_bounds = array<i64: 1, 32>}, {transform_indices = @transform_3, window_bounds = array<i64: 16, 32>}]} {
    %c0 = arith.constant 0 : index
    %c0_0 = arith.constant 0 : index
    %0 = vector.load %arg1[%c0, %c0_0] : memref<16x32xf32, #tpu.memory_space<vmem>>, vector<16x32xf32>
    %cst = arith.constant dense<0.000000e+00> : vector<16xf32>
    %1 = vector.multi_reduction <add>, %0, %cst [1] : vector<16x32xf32> to vector<16xf32>
    %2 = vector.shape_cast %1 : vector<16xf32> to vector<16x1xf32>
    %cst_1 = arith.constant 3.200000e+01 : f32
    %3 = vector.broadcast %cst_1 : f32 to vector<16x1xf32>
    %4 = arith.divf %2, %3 : vector<16x1xf32>
    %5 = vector.broadcast %4 : vector<16x1xf32> to vector<16x32xf32>
    %6 = arith.subf %0, %5 : vector<16x32xf32>
    %7 = arith.mulf %6, %6 : vector<16x32xf32>
    %cst_2 = arith.constant dense<0.000000e+00> : vector<16xf32>
    %8 = vector.multi_reduction <add>, %7, %cst_2 [1] : vector<16x32xf32> to vector<16xf32>
    %9 = vector.shape_cast %8 : vector<16xf32> to vector<16x1xf32>
    %cst_3 = arith.constant 3.200000e+01 : f32
    %10 = vector.broadcast %cst_3 : f32 to vector<16x1xf32>
    %11 = arith.divf %9, %10 : vector<16x1xf32>
    %cst_4 = arith.constant 9.99999996E-13 : f32
    %12 = vector.broadcast %cst_4 : f32 to vector<16x1xf32>
    %13 = arith.addf %11, %12 : vector<16x1xf32>
    %14 = math.rsqrt %13 : vector<16x1xf32>
    %15 = vector.broadcast %14 : vector<16x1xf32> to vector<16x32xf32>
    %16 = arith.mulf %6, %15 : vector<16x32xf32>
    %c0_5 = arith.constant 0 : index
    %c0_6 = arith.constant 0 : index
    %17 = vector.load %arg2[%c0_5, %c0_6] : memref<1x32xf32, #tpu.memory_space<vmem>>, vector<1x32xf32>
    %18 = vector.broadcast %17 : vector<1x32xf32> to vector<16x32xf32>
    %19 = arith.mulf %16, %18 : vector<16x32xf32>
    %c0_7 = arith.constant 0 : index
    %c0_8 = arith.constant 0 : index
    %20 = vector.load %arg3[%c0_7, %c0_8] : memref<1x32xf32, #tpu.memory_space<vmem>>, vector<1x32xf32>
    %21 = vector.broadcast %20 : vector<1x32xf32> to vector<16x32xf32>
    %22 = arith.addf %19, %21 : vector<16x32xf32>
    %23 = arith.truncf %22 : vector<16x32xf32> to vector<16x32xbf16>
    %c0_9 = arith.constant 0 : index
    %c0_10 = arith.constant 0 : index
    %24 = vector.load %arg4[%c0_9, %c0_10] : memref<16x32xbf16, #tpu.memory_space<vmem>>, vector<16x32xbf16>
    tpu.vector_store %arg4[%c0_9, %c0_10], %23 {strides = array<i32>} : memref<16x32xbf16, #tpu.memory_space<vmem>>, vector<16x32xbf16>,
    return
  }
  func.func @transform_0(%arg0: i32) -> (i32, i32) {
    %c0_i32 = arith.constant 0 : i32
    %c0_i32_0 = arith.constant 0 : i32
    return %arg0, %c0_i32 : i32, i32
  }
  func.func @transform_1(%arg0: i32) -> (i32, i32) {
    %c0_i32 = arith.constant 0 : i32
    %c0_i32_0 = arith.constant 0 : i32
    %c0_i32_1 = arith.constant 0 : i32
    return %c0_i32, %c0_i32_0 : i32, i32
  }
  func.func @transform_2(%arg0: i32) -> (i32, i32) {
    %c0_i32 = arith.constant 0 : i32
    %c0_i32_0 = arith.constant 0 : i32
    %c0_i32_1 = arith.constant 0 : i32
    return %c0_i32, %c0_i32_0 : i32, i32
  }
  func.func @transform_3(%arg0: i32) -> (i32, i32) {
    %c0_i32 = arith.constant 0 : i32
    %c0_i32_0 = arith.constant 0 : i32
    return %arg0, %c0_i32 : i32, i32
  }
}

module attributes {stable_mosaic.version = 11 : i64} {
  func.func @_linear_kernel(%arg0: i32, %arg1: i32, %arg2: i32, %arg3: memref<16x128xbf16, #tpu.memory_space<vmem>>, %arg4: memref<128x128xbf16, #tpu.memory_space<vmem>>, %arg5: memref<1x128xf32, #tpu.memory_space<vmem>>, %arg6: memref<16x128xbf16, #tpu.memory_space<vmem>>, %arg7: memref<16x128xf32, #tpu.memory_space<vmem>>) attributes {dimension_semantics = [#tpu.dimension_semantics<parallel>, #tpu.dimension_semantics<parallel>, #tpu.dimension_semantics<arbitrary>], iteration_bounds = array<i64: 1, 1, 1>, scalar_prefetch = 0 : i64, scratch_operands = 1 : i64, tpu.core_type = #tpu.core_type<tc>, window_params = [{transform_indices = @transform_0, window_bounds = array<i64: 16, 128>}, {transform_indices = @transform_1, window_bounds = array<i64: 128, 128>}, {transform_indices = @transform_2, window_bounds = array<i64: 1, 128>}, {transform_indices = @transform_3, window_bounds = array<i64: 16, 128>}]} {
    %c0_i32 = arith.constant 0 : i32
    %0 = arith.cmpi eq, %arg2, %c0_i32 : i32
    %1 = arith.extui %0 : i1 to i32
    %c0_i32_0 = arith.constant 0 : i32
    %2 = arith.cmpi ne, %1, %c0_i32_0 : i32
    scf.if %2 {
      %cst_10 = arith.constant 0.000000e+00 : f32
      %12 = vector.broadcast %cst_10 : f32 to vector<16x128xf32>
      %c0_11 = arith.constant 0 : index
      %c0_12 = arith.constant 0 : index
      %13 = vector.load %arg7[%c0_11, %c0_12] : memref<16x128xf32, #tpu.memory_space<vmem>>, vector<16x128xf32>
      tpu.vector_store %arg7[%c0_11, %c0_12], %12 {strides = array<i32>} : memref<16x128xf32, #tpu.memory_space<vmem>>, vector<16x128xf32>,
    } else {
    }
    %c0 = arith.constant 0 : index
    %c0_1 = arith.constant 0 : index
    %3 = vector.load %arg7[%c0, %c0_1] : memref<16x128xf32, #tpu.memory_space<vmem>>, vector<16x128xf32>
    %c0_2 = arith.constant 0 : index
    %c0_3 = arith.constant 0 : index
    %4 = vector.load %arg3[%c0_2, %c0_3] : memref<16x128xbf16, #tpu.memory_space<vmem>>, vector<16x128xbf16>
    %c0_4 = arith.constant 0 : index
    %c0_5 = arith.constant 0 : index
    %5 = vector.load %arg4[%c0_4, %c0_5] : memref<128x128xbf16, #tpu.memory_space<vmem>>, vector<128x128xbf16>
    %cst = arith.constant dense<0.000000e+00> : vector<16x128xf32>
    %6 = tpu.matmul %4, %5, %cst {dimension_numbers = #tpu.dot_dimension_numbers<[1], [0], [0], [1], [0, 0, 1, 1], [], []>} : vector<16x128xbf16>, vector<128x128xbf16>, vector<16x128xf32> -> vector<16x128xf32>
    %7 = arith.addf %3, %6 : vector<16x128xf32>
    %c0_6 = arith.constant 0 : index
    %c0_7 = arith.constant 0 : index
    %8 = vector.load %arg7[%c0_6, %c0_7] : memref<16x128xf32, #tpu.memory_space<vmem>>, vector<16x128xf32>
    tpu.vector_store %arg7[%c0_6, %c0_7], %7 {strides = array<i32>} : memref<16x128xf32, #tpu.memory_space<vmem>>, vector<16x128xf32>,
    %c0_i32_8 = arith.constant 0 : i32
    %9 = arith.cmpi eq, %arg2, %c0_i32_8 : i32
    %10 = arith.extui %9 : i1 to i32
    %c0_i32_9 = arith.constant 0 : i32
    %11 = arith.cmpi ne, %10, %c0_i32_9 : i32
    scf.if %11 {
      %c0_10 = arith.constant 0 : index
      %c0_11 = arith.constant 0 : index
      %12 = vector.load %arg7[%c0_10, %c0_11] : memref<16x128xf32, #tpu.memory_space<vmem>>, vector<16x128xf32>
      %c0_12 = arith.constant 0 : index
      %c0_13 = arith.constant 0 : index
      %13 = vector.load %arg5[%c0_12, %c0_13] : memref<1x128xf32, #tpu.memory_space<vmem>>, vector<1x128xf32>
      %14 = vector.broadcast %13 : vector<1x128xf32> to vector<16x128xf32>
      %15 = arith.addf %12, %14 : vector<16x128xf32>
      %16 = arith.truncf %15 : vector<16x128xf32> to vector<16x128xbf16>
      %c0_14 = arith.constant 0 : index
      %c0_15 = arith.constant 0 : index
      %17 = vector.load %arg6[%c0_14, %c0_15] : memref<16x128xbf16, #tpu.memory_space<vmem>>, vector<16x128xbf16>
      tpu.vector_store %arg6[%c0_14, %c0_15], %16 {strides = array<i32>} : memref<16x128xbf16, #tpu.memory_space<vmem>>, vector<16x128xbf16>,
    } else {
    }
    return
  }
  func.func @transform_0(%arg0: i32, %arg1: i32, %arg2: i32) -> (i32, i32) {
    %c0_i32 = arith.constant 0 : i32
    return %arg0, %arg2 : i32, i32
  }
  func.func @transform_1(%arg0: i32, %arg1: i32, %arg2: i32) -> (i32, i32) {
    %c0_i32 = arith.constant 0 : i32
    return %arg2, %arg1 : i32, i32
  }
  func.func @transform_2(%arg0: i32, %arg1: i32, %arg2: i32) -> (i32, i32) {
    %c0_i32 = arith.constant 0 : i32
    %c0_i32_0 = arith.constant 0 : i32
    return %c0_i32, %arg1 : i32, i32
  }
  func.func @transform_3(%arg0: i32, %arg1: i32, %arg2: i32) -> (i32, i32) {
    %c0_i32 = arith.constant 0 : i32
    return %arg0, %arg1 : i32, i32
  }
}

module attributes {stable_mosaic.version = 11 : i64} {
  func.func @_attn_kernel(%arg0: i32, %arg1: i32, %arg2: memref<1x8x32xbf16, #tpu.memory_space<vmem>>, %arg3: memref<1x8x32xbf16, #tpu.memory_space<vmem>>, %arg4: memref<1x8x32xbf16, #tpu.memory_space<vmem>>, %arg5: memref<1x1x8xf32, #tpu.memory_space<vmem>>, %arg6: memref<1x8x32xbf16, #tpu.memory_space<vmem>>) attributes {dimension_semantics = [#tpu.dimension_semantics<parallel>, #tpu.dimension_semantics<parallel>], iteration_bounds = array<i64: 2, 1>, scalar_prefetch = 0 : i64, scratch_operands = 0 : i64, tpu.core_type = #tpu.core_type<tc>, window_params = [{transform_indices = @transform_0, window_bounds = array<i64: 1, 8, 32>}, {transform_indices = @transform_1, window_bounds = array<i64: 1, 8, 32>}, {transform_indices = @transform_2, window_bounds = array<i64: 1, 8, 32>}, {transform_indices = @transform_3, window_bounds = array<i64: 1, 1, 8>}, {transform_indices = @transform_4, window_bounds = array<i64: 1, 8, 32>}]} {
    %c0 = arith.constant 0 : index
    %c0_0 = arith.constant 0 : index
    %c0_1 = arith.constant 0 : index
    %0 = vector.load %arg5[%c0, %c0_0, %c0_1] : memref<1x1x8xf32, #tpu.memory_space<vmem>>, vector<1x1x8xf32>
    %1 = vector.shape_cast %0 : vector<1x1x8xf32> to vector<1x8xf32>
    %c0_2 = arith.constant 0 : index
    %c0_3 = arith.constant 0 : index
    %c0_4 = arith.constant 0 : index
    %2 = vector.load %arg2[%c0_2, %c0_3, %c0_4] : memref<1x8x32xbf16, #tpu.memory_space<vmem>>, vector<1x8x16xbf16>
    %3 = vector.shape_cast %2 : vector<1x8x16xbf16> to vector<8x16xbf16>
    %c0_5 = arith.constant 0 : index
    %c0_6 = arith.constant 0 : index
    %c0_7 = arith.constant 0 : index
    %4 = vector.load %arg3[%c0_5, %c0_6, %c0_7] : memref<1x8x32xbf16, #tpu.memory_space<vmem>>, vector<1x8x16xbf16>
    %5 = vector.shape_cast %4 : vector<1x8x16xbf16> to vector<8x16xbf16>
    %c0_8 = arith.constant 0 : index
    %c0_9 = arith.constant 0 : index
    %c0_10 = arith.constant 0 : index
    %6 = vector.load %arg4[%c0_8, %c0_9, %c0_10] : memref<1x8x32xbf16, #tpu.memory_space<vmem>>, vector<1x8x16xbf16>
    %7 = vector.shape_cast %6 : vector<1x8x16xbf16> to vector<8x16xbf16>
    %cst = arith.constant dense<0.000000e+00> : vector<8x8xf32>
    %8 = tpu.matmul %3, %5, %cst {dimension_numbers = #tpu.dot_dimension_numbers<[1], [1], [0], [0], [0, 0, 1, 0], [], []>} : vector<8x16xbf16>, vector<8x16xbf16>, vector<8x8xf32> -> vector<8x8xf32>
    %cst_11 = arith.constant 2.500000e-01 : f32
    %9 = vector.broadcast %cst_11 : f32 to vector<8x8xf32>
    %10 = arith.mulf %8, %9 : vector<8x8xf32>
    %11 = vector.broadcast %1 : vector<1x8xf32> to vector<8x8xf32>
    %12 = arith.addf %10, %11 : vector<8x8xf32>
    %cst_12 = arith.constant dense<0xFF800000> : vector<8xf32>
    %13 = vector.multi_reduction <maximumf>, %12, %cst_12 [1] : vector<8x8xf32> to vector<8xf32>
    %14 = vector.shape_cast %13 : vector<8xf32> to vector<8x1xf32>
    %15 = vector.broadcast %14 : vector<8x1xf32> to vector<8x8xf32>
    %16 = arith.subf %12, %15 : vector<8x8xf32>
    %17 = math.exp %16 : vector<8x8xf32>
    %cst_13 = arith.constant dense<0.000000e+00> : vector<8xf32>
    %18 = vector.multi_reduction <add>, %17, %cst_13 [1] : vector<8x8xf32> to vector<8xf32>
    %19 = vector.shape_cast %18 : vector<8xf32> to vector<8x1xf32>
    %20 = tpu.reciprocal %19 {approx = true} : vector<8x1xf32> -> vector<8x1xf32>
    %21 = vector.broadcast %20 : vector<8x1xf32> to vector<8x8xf32>
    %22 = arith.mulf %17, %21 : vector<8x8xf32>
    %23 = arith.truncf %22 : vector<8x8xf32> to vector<8x8xbf16>
    %cst_14 = arith.constant dense<0.000000e+00> : vector<8x16xf32>
    %24 = tpu.matmul %23, %7, %cst_14 {dimension_numbers = #tpu.dot_dimension_numbers<[1], [0], [0], [1], [0, 0, 1, 1], [], []>} : vector<8x8xbf16>, vector<8x16xbf16>, vector<8x16xf32> -> vector<8x16xf32>
    %25 = arith.truncf %24 : vector<8x16xf32> to vector<8x16xbf16>
    %c0_15 = arith.constant 0 : index
    %c0_16 = arith.constant 0 : index
    %c0_17 = arith.constant 0 : index
    %26 = vector.load %arg6[%c0_15, %c0_16, %c0_17] : memref<1x8x32xbf16, #tpu.memory_space<vmem>>, vector<1x8x16xbf16>
    %27 = vector.shape_cast %26 : vector<1x8x16xbf16> to vector<8x16xbf16>
    %28 = vector.shape_cast %25 : vector<8x16xbf16> to vector<1x8x16xbf16>
    tpu.vector_store %arg6[%c0_15, %c0_16, %c0_17], %28 {strides = array<i32>} : memref<1x8x32xbf16, #tpu.memory_space<vmem>>, vector<1x8x16xbf16>,
    %c0_18 = arith.constant 0 : index
    %c0_19 = arith.constant 0 : index
    %c16 = arith.constant 16 : index
    %29 = vector.load %arg2[%c0_18, %c0_19, %c16] : memref<1x8x32xbf16, #tpu.memory_space<vmem>>, vector<1x8x16xbf16>
    %30 = vector.shape_cast %29 : vector<1x8x16xbf16> to vector<8x16xbf16>
    %c0_20 = arith.constant 0 : index
    %c0_21 = arith.constant 0 : index
    %c16_22 = arith.constant 16 : index
    %31 = vector.load %arg3[%c0_20, %c0_21, %c16_22] : memref<1x8x32xbf16, #tpu.memory_space<vmem>>, vector<1x8x16xbf16>
    %32 = vector.shape_cast %31 : vector<1x8x16xbf16> to vector<8x16xbf16>
    %c0_23 = arith.constant 0 : index
    %c0_24 = arith.constant 0 : index
    %c16_25 = arith.constant 16 : index
    %33 = vector.load %arg4[%c0_23, %c0_24, %c16_25] : memref<1x8x32xbf16, #tpu.memory_space<vmem>>, vector<1x8x16xbf16>
    %34 = vector.shape_cast %33 : vector<1x8x16xbf16> to vector<8x16xbf16>
    %cst_26 = arith.constant dense<0.000000e+00> : vector<8x8xf32>
    %35 = tpu.matmul %30, %32, %cst_26 {dimension_numbers = #tpu.dot_dimension_numbers<[1], [1], [0], [0], [0, 0, 1, 0], [], []>} : vector<8x16xbf16>, vector<8x16xbf16>, vector<8x8xf32> -> vector<8x8xf32>
    %cst_27 = arith.constant 2.500000e-01 : f32
    %36 = vector.broadcast %cst_27 : f32 to vector<8x8xf32>
    %37 = arith.mulf %35, %36 : vector<8x8xf32>
    %38 = vector.broadcast %1 : vector<1x8xf32> to vector<8x8xf32>
    %39 = arith.addf %37, %38 : vector<8x8xf32>
    %cst_28 = arith.constant dense<0xFF800000> : vector<8xf32>
    %40 = vector.multi_reduction <maximumf>, %39, %cst_28 [1] : vector<8x8xf32> to vector<8xf32>
    %41 = vector.shape_cast %40 : vector<8xf32> to vector<8x1xf32>
    %42 = vector.broadcast %41 : vector<8x1xf32> to vector<8x8xf32>
    %43 = arith.subf %39, %42 : vector<8x8xf32>
    %44 = math.exp %43 : vector<8x8xf32>
    %cst_29 = arith.constant dense<0.000000e+00> : vector<8xf32>
    %45 = vector.multi_reduction <add>, %44, %cst_29 [1] : vector<8x8xf32> to vector<8xf32>
    %46 = vector.shape_cast %45 : vector<8xf32> to vector<8x1xf32>
    %47 = tpu.reciprocal %46 {approx = true} : vector<8x1xf32> -> vector<8x1xf32>
    %48 = vector.broadcast %47 : vector<8x1xf32> to vector<8x8xf32>
    %49 = arith.mulf %44, %48 : vector<8x8xf32>
    %50 = arith.truncf %49 : vector<8x8xf32> to vector<8x8xbf16>
    %cst_30 = arith.constant dense<0.000000e+00> : vector<8x16xf32>
    %51 = tpu.matmul %50, %34, %cst_30 {dimension_numbers = #tpu.dot_dimension_numbers<[1], [0], [0], [1], [0, 0, 1, 1], [], []>} : vector<8x8xbf16>, vector<8x16xbf16>, vector<8x16xf32> -> vector<8x16xf32>
    %52 = arith.truncf %51 : vector<8x16xf32> to vector<8x16xbf16>
    %c0_31 = arith.constant 0 : index
    %c0_32 = arith.constant 0 : index
    %c16_33 = arith.constant 16 : index
    %53 = vector.load %arg6[%c0_31, %c0_32, %c16_33] : memref<1x8x32xbf16, #tpu.memory_space<vmem>>, vector<1x8x16xbf16>
    %54 = vector.shape_cast %53 : vector<1x8x16xbf16> to vector<8x16xbf16>
    %55 = vector.shape_cast %52 : vector<8x16xbf16> to vector<1x8x16xbf16>
    tpu.vector_store %arg6[%c0_31, %c0_32, %c16_33], %55 {strides = array<i32>} : memref<1x8x32xbf16, #tpu.memory_space<vmem>>, vector<1x8x16xbf16>,
    return
  }
  func.func @transform_0(%arg0: i32, %arg1: i32) -> (i32, i32, i32) {
    %c0_i32 = arith.constant 0 : i32
    %c0_i32_0 = arith.constant 0 : i32
    return %arg0, %arg1, %c0_i32 : i32, i32, i32
  }
  func.func @transform_1(%arg0: i32, %arg1: i32) -> (i32, i32, i32) {
    %c0_i32 = arith.constant 0 : i32
    %c0_i32_0 = arith.constant 0 : i32
    %c0_i32_1 = arith.constant 0 : i32
    return %arg0, %c0_i32, %c0_i32_0 : i32, i32, i32
  }
  func.func @transform_2(%arg0: i32, %arg1: i32) -> (i32, i32, i32) {
    %c0_i32 = arith.constant 0 : i32
    %c0_i32_0 = arith.constant 0 : i32
    %c0_i32_1 = arith.constant 0 : i32
    return %arg0, %c0_i32, %c0_i32_0 : i32, i32, i32
  }
  func.func @transform_3(%arg0: i32, %arg1: i32) -> (i32, i32, i32) {
    %c0_i32 = arith.constant 0 : i32
    %c0_i32_0 = arith.constant 0 : i32
    %c0_i32_1 = arith.constant 0 : i32
    return %arg0, %c0_i32, %c0_i32_0 : i32, i32, i32
  }
  func.func @transform_4(%arg0: i32, %arg1: i32) -> (i32, i32, i32) {
    %c0_i32 = arith.constant 0 : i32
    %c0_i32_0 = arith.constant 0 : i32
    return %arg0, %arg1, %c0_i32 : i32, i32, i32
  }
}

module attributes {stable_mosaic.version = 11 : i64} {
  func.func @_linear_ln_res_kernel(%arg0: i32, %arg1: i32, %arg2: memref<16x128xbf16, #tpu.memory_space<vmem>>, %arg3: memref<128x32xbf16, #tpu.memory_space<vmem>>, %arg4: memref<1x32xf32, #tpu.memory_space<vmem>>, %arg5: memref<16x32xbf16, #tpu.memory_space<vmem>>, %arg6: memref<1x32xf32, #tpu.memory_space<vmem>>, %arg7: memref<1x32xf32, #tpu.memory_space<vmem>>, %arg8: memref<16x32xbf16, #tpu.memory_space<vmem>>, %arg9: memref<16x32xf32, #tpu.memory_space<vmem>>) attributes {dimension_semantics = [#tpu.dimension_semantics<parallel>, #tpu.dimension_semantics<arbitrary>], iteration_bounds = array<i64: 1, 1>, scalar_prefetch = 0 : i64, scratch_operands = 1 : i64, tpu.core_type = #tpu.core_type<tc>, window_params = [{transform_indices = @transform_0, window_bounds = array<i64: 16, 128>}, {transform_indices = @transform_1, window_bounds = array<i64: 128, 32>}, {pipeline_mode = #tpu.pipeline_mode<synchronous>, transform_indices = @transform_2, window_bounds = array<i64: 1, 32>}, {transform_indices = @transform_3, window_bounds = array<i64: 16, 32>}, {pipeline_mode = #tpu.pipeline_mode<synchronous>, transform_indices = @transform_4, window_bounds = array<i64: 1, 32>}, {pipeline_mode = #tpu.pipeline_mode<synchronous>, transform_indices = @transform_5, window_bounds = array<i64: 1, 32>}, {transform_indices = @transform_6, window_bounds = array<i64: 16, 32>}]} {
    %c0_i32 = arith.constant 0 : i32
    %0 = arith.cmpi eq, %arg1, %c0_i32 : i32
    %1 = arith.extui %0 : i1 to i32
    %c0_i32_0 = arith.constant 0 : i32
    %2 = arith.cmpi ne, %1, %c0_i32_0 : i32
    scf.if %2 {
      %cst_10 = arith.constant 0.000000e+00 : f32
      %12 = vector.broadcast %cst_10 : f32 to vector<16x32xf32>
      %c0_11 = arith.constant 0 : index
      %c0_12 = arith.constant 0 : index
      %13 = vector.load %arg9[%c0_11, %c0_12] : memref<16x32xf32, #tpu.memory_space<vmem>>, vector<16x32xf32>
      tpu.vector_store %arg9[%c0_11, %c0_12], %12 {strides = array<i32>} : memref<16x32xf32, #tpu.memory_space<vmem>>, vector<16x32xf32>,
    } else {
    }
    %c0 = arith.constant 0 : index
    %c0_1 = arith.constant 0 : index
    %3 = vector.load %arg9[%c0, %c0_1] : memref<16x32xf32, #tpu.memory_space<vmem>>, vector<16x32xf32>
    %c0_2 = arith.constant 0 : index
    %c0_3 = arith.constant 0 : index
    %4 = vector.load %arg2[%c0_2, %c0_3] : memref<16x128xbf16, #tpu.memory_space<vmem>>, vector<16x128xbf16>
    %c0_4 = arith.constant 0 : index
    %c0_5 = arith.constant 0 : index
    %5 = vector.load %arg3[%c0_4, %c0_5] : memref<128x32xbf16, #tpu.memory_space<vmem>>, vector<128x32xbf16>
    %cst = arith.constant dense<0.000000e+00> : vector<16x32xf32>
    %6 = tpu.matmul %4, %5, %cst {dimension_numbers = #tpu.dot_dimension_numbers<[1], [0], [0], [1], [0, 0, 1, 1], [], []>} : vector<16x128xbf16>, vector<128x32xbf16>, vector<16x32xf32> -> vector<16x32xf32>
    %7 = arith.addf %3, %6 : vector<16x32xf32>
    %c0_6 = arith.constant 0 : index
    %c0_7 = arith.constant 0 : index
    %8 = vector.load %arg9[%c0_6, %c0_7] : memref<16x32xf32, #tpu.memory_space<vmem>>, vector<16x32xf32>
    tpu.vector_store %arg9[%c0_6, %c0_7], %7 {strides = array<i32>} : memref<16x32xf32, #tpu.memory_space<vmem>>, vector<16x32xf32>,
    %c0_i32_8 = arith.constant 0 : i32
    %9 = arith.cmpi eq, %arg1, %c0_i32_8 : i32
    %10 = arith.extui %9 : i1 to i32
    %c0_i32_9 = arith.constant 0 : i32
    %11 = arith.cmpi ne, %10, %c0_i32_9 : i32
    scf.if %11 {
      %c0_10 = arith.constant 0 : index
      %c0_11 = arith.constant 0 : index
      %12 = vector.load %arg9[%c0_10, %c0_11] : memref<16x32xf32, #tpu.memory_space<vmem>>, vector<16x32xf32>
      %c0_12 = arith.constant 0 : index
      %c0_13 = arith.constant 0 : index
      %13 = vector.load %arg4[%c0_12, %c0_13] : memref<1x32xf32, #tpu.memory_space<vmem>>, vector<1x32xf32>
      %14 = vector.broadcast %13 : vector<1x32xf32> to vector<16x32xf32>
      %15 = arith.addf %12, %14 : vector<16x32xf32>
      %c0_14 = arith.constant 0 : index
      %c0_15 = arith.constant 0 : index
      %16 = vector.load %arg5[%c0_14, %c0_15] : memref<16x32xbf16, #tpu.memory_space<vmem>>, vector<16x32xbf16>
      %17 = arith.extf %16 : vector<16x32xbf16> to vector<16x32xf32>
      %18 = arith.addf %15, %17 : vector<16x32xf32>
      %cst_16 = arith.constant dense<0.000000e+00> : vector<16xf32>
      %19 = vector.multi_reduction <add>, %18, %cst_16 [1] : vector<16x32xf32> to vector<16xf32>
      %20 = vector.shape_cast %19 : vector<16xf32> to vector<16x1xf32>
      %cst_17 = arith.constant 3.200000e+01 : f32
      %21 = vector.broadcast %cst_17 : f32 to vector<16x1xf32>
      %22 = arith.divf %20, %21 : vector<16x1xf32>
      %23 = vector.broadcast %22 : vector<16x1xf32> to vector<16x32xf32>
      %24 = arith.subf %18, %23 : vector<16x32xf32>
      %25 = arith.mulf %24, %24 : vector<16x32xf32>
      %cst_18 = arith.constant dense<0.000000e+00> : vector<16xf32>
      %26 = vector.multi_reduction <add>, %25, %cst_18 [1] : vector<16x32xf32> to vector<16xf32>
      %27 = vector.shape_cast %26 : vector<16xf32> to vector<16x1xf32>
      %cst_19 = arith.constant 3.200000e+01 : f32
      %28 = vector.broadcast %cst_19 : f32 to vector<16x1xf32>
      %29 = arith.divf %27, %28 : vector<16x1xf32>
      %cst_20 = arith.constant 9.99999996E-13 : f32
      %30 = vector.broadcast %cst_20 : f32 to vector<16x1xf32>
      %31 = arith.addf %29, %30 : vector<16x1xf32>
      %32 = math.rsqrt %31 : vector<16x1xf32>
      %33 = vector.broadcast %32 : vector<16x1xf32> to vector<16x32xf32>
      %34 = arith.mulf %24, %33 : vector<16x32xf32>
      %c0_21 = arith.constant 0 : index
      %c0_22 = arith.constant 0 : index
      %35 = vector.load %arg6[%c0_21, %c0_22] : memref<1x32xf32, #tpu.memory_space<vmem>>, vector<1x32xf32>
      %36 = vector.broadcast %35 : vector<1x32xf32> to vector<16x32xf32>
      %37 = arith.mulf %34, %36 : vector<16x32xf32>
      %c0_23 = arith.constant 0 : index
      %c0_24 = arith.constant 0 : index
      %38 = vector.load %arg7[%c0_23, %c0_24] : memref<1x32xf32, #tpu.memory_space<vmem>>, vector<1x32xf32>
      %39 = vector.broadcast %38 : vector<1x32xf32> to vector<16x32xf32>
      %40 = arith.addf %37, %39 : vector<16x32xf32>
      %41 = arith.truncf %40 : vector<16x32xf32> to vector<16x32xbf16>
      %c0_25 = arith.constant 0 : index
      %c0_26 = arith.constant 0 : index
      %42 = vector.load %arg8[%c0_25, %c0_26] : memref<16x32xbf16, #tpu.memory_space<vmem>>, vector<16x32xbf16>
      tpu.vector_store %arg8[%c0_25, %c0_26], %41 {strides = array<i32>} : memref<16x32xbf16, #tpu.memory_space<vmem>>, vector<16x32xbf16>,
    } else {
    }
    return
  }
  func.func @transform_0(%arg0: i32, %arg1: i32) -> (i32, i32) {
    %c0_i32 = arith.constant 0 : i32
    return %arg0, %arg1 : i32, i32
  }
  func.func @transform_1(%arg0: i32, %arg1: i32) -> (i32, i32) {
    %c0_i32 = arith.constant 0 : i32
    %c0_i32_0 = arith.constant 0 : i32
    return %arg1, %c0_i32 : i32, i32
  }
  func.func @transform_2(%arg0: i32, %arg1: i32) -> (i32, i32) {
    %c0_i32 = arith.constant 0 : i32
    %c0_i32_0 = arith.constant 0 : i32
    %c0_i32_1 = arith.constant 0 : i32
    return %c0_i32, %c0_i32_0 : i32, i32
  }
  func.func @transform_3(%arg0: i32, %arg1: i32) -> (i32, i32) {
    %c0_i32 = arith.constant 0 : i32
    %c0_i32_0 = arith.constant 0 : i32
    return %arg0, %c0_i32 : i32, i32
  }
  func.func @transform_4(%arg0: i32, %arg1: i32) -> (i32, i32) {
    %c0_i32 = arith.constant 0 : i32
    %c0_i32_0 = arith.constant 0 : i32
    %c0_i32_1 = arith.constant 0 : i32
    return %c0_i32, %c0_i32_0 : i32, i32
  }
  func.func @transform_5(%arg0: i32, %arg1: i32) -> (i32, i32) {
    %c0_i32 = arith.constant 0 : i32
    %c0_i32_0 = arith.constant 0 : i32
    %c0_i32_1 = arith.constant 0 : i32
    return %c0_i32, %c0_i32_0 : i32, i32
  }
  func.func @transform_6(%arg0: i32, %arg1: i32) -> (i32, i32) {
    %c0_i32 = arith.constant 0 : i32
    %c0_i32_0 = arith.constant 0 : i32
    return %arg0, %c0_i32 : i32, i32
  }
}

module attributes {stable_mosaic.version = 11 : i64} {
  func.func @_linear_kernel(%arg0: i32, %arg1: i32, %arg2: i32, %arg3: memref<16x128xbf16, #tpu.memory_space<vmem>>, %arg4: memref<128x128xbf16, #tpu.memory_space<vmem>>, %arg5: memref<1x128xf32, #tpu.memory_space<vmem>>, %arg6: memref<16x128xbf16, #tpu.memory_space<vmem>>, %arg7: memref<16x128xf32, #tpu.memory_space<vmem>>) attributes {dimension_semantics = [#tpu.dimension_semantics<parallel>, #tpu.dimension_semantics<parallel>, #tpu.dimension_semantics<arbitrary>], iteration_bounds = array<i64: 1, 1, 1>, scalar_prefetch = 0 : i64, scratch_operands = 1 : i64, tpu.core_type = #tpu.core_type<tc>, window_params = [{transform_indices = @transform_0, window_bounds = array<i64: 16, 128>}, {transform_indices = @transform_1, window_bounds = array<i64: 128, 128>}, {transform_indices = @transform_2, window_bounds = array<i64: 1, 128>}, {transform_indices = @transform_3, window_bounds = array<i64: 16, 128>}]} {
    %c0_i32 = arith.constant 0 : i32
    %0 = arith.cmpi eq, %arg2, %c0_i32 : i32
    %1 = arith.extui %0 : i1 to i32
    %c0_i32_0 = arith.constant 0 : i32
    %2 = arith.cmpi ne, %1, %c0_i32_0 : i32
    scf.if %2 {
      %cst_10 = arith.constant 0.000000e+00 : f32
      %12 = vector.broadcast %cst_10 : f32 to vector<16x128xf32>
      %c0_11 = arith.constant 0 : index
      %c0_12 = arith.constant 0 : index
      %13 = vector.load %arg7[%c0_11, %c0_12] : memref<16x128xf32, #tpu.memory_space<vmem>>, vector<16x128xf32>
      tpu.vector_store %arg7[%c0_11, %c0_12], %12 {strides = array<i32>} : memref<16x128xf32, #tpu.memory_space<vmem>>, vector<16x128xf32>,
    } else {
    }
    %c0 = arith.constant 0 : index
    %c0_1 = arith.constant 0 : index
    %3 = vector.load %arg7[%c0, %c0_1] : memref<16x128xf32, #tpu.memory_space<vmem>>, vector<16x128xf32>
    %c0_2 = arith.constant 0 : index
    %c0_3 = arith.constant 0 : index
    %4 = vector.load %arg3[%c0_2, %c0_3] : memref<16x128xbf16, #tpu.memory_space<vmem>>, vector<16x128xbf16>
    %c0_4 = arith.constant 0 : index
    %c0_5 = arith.constant 0 : index
    %5 = vector.load %arg4[%c0_4, %c0_5] : memref<128x128xbf16, #tpu.memory_space<vmem>>, vector<128x128xbf16>
    %cst = arith.constant dense<0.000000e+00> : vector<16x128xf32>
    %6 = tpu.matmul %4, %5, %cst {dimension_numbers = #tpu.dot_dimension_numbers<[1], [0], [0], [1], [0, 0, 1, 1], [], []>} : vector<16x128xbf16>, vector<128x128xbf16>, vector<16x128xf32> -> vector<16x128xf32>
    %7 = arith.addf %3, %6 : vector<16x128xf32>
    %c0_6 = arith.constant 0 : index
    %c0_7 = arith.constant 0 : index
    %8 = vector.load %arg7[%c0_6, %c0_7] : memref<16x128xf32, #tpu.memory_space<vmem>>, vector<16x128xf32>
    tpu.vector_store %arg7[%c0_6, %c0_7], %7 {strides = array<i32>} : memref<16x128xf32, #tpu.memory_space<vmem>>, vector<16x128xf32>,
    %c0_i32_8 = arith.constant 0 : i32
    %9 = arith.cmpi eq, %arg2, %c0_i32_8 : i32
    %10 = arith.extui %9 : i1 to i32
    %c0_i32_9 = arith.constant 0 : i32
    %11 = arith.cmpi ne, %10, %c0_i32_9 : i32
    scf.if %11 {
      %c0_10 = arith.constant 0 : index
      %c0_11 = arith.constant 0 : index
      %12 = vector.load %arg7[%c0_10, %c0_11] : memref<16x128xf32, #tpu.memory_space<vmem>>, vector<16x128xf32>
      %c0_12 = arith.constant 0 : index
      %c0_13 = arith.constant 0 : index
      %13 = vector.load %arg5[%c0_12, %c0_13] : memref<1x128xf32, #tpu.memory_space<vmem>>, vector<1x128xf32>
      %14 = vector.broadcast %13 : vector<1x128xf32> to vector<16x128xf32>
      %15 = arith.addf %12, %14 : vector<16x128xf32>
      %cst_14 = arith.constant 5.000000e-01 : f32
      %16 = vector.broadcast %cst_14 : f32 to vector<16x128xf32>
      %17 = arith.mulf %16, %15 : vector<16x128xf32>
      %cst_15 = arith.constant 4.471500e-02 : f32
      %18 = vector.broadcast %cst_15 : f32 to vector<16x128xf32>
      %19 = arith.mulf %18, %15 : vector<16x128xf32>
      %20 = arith.mulf %19, %15 : vector<16x128xf32>
      %21 = arith.mulf %20, %15 : vector<16x128xf32>
      %22 = arith.addf %15, %21 : vector<16x128xf32>
      %cst_16 = arith.constant 0.797884583 : f32
      %23 = vector.broadcast %cst_16 : f32 to vector<16x128xf32>
      %24 = arith.mulf %23, %22 : vector<16x128xf32>
      %25 = math.tanh %24 : vector<16x128xf32>
      %cst_17 = arith.constant 1.000000e+00 : f32
      %26 = vector.broadcast %cst_17 : f32 to vector<16x128xf32>
      %27 = arith.addf %26, %25 : vector<16x128xf32>
      %28 = arith.mulf %17, %27 : vector<16x128xf32>
      %29 = arith.truncf %28 : vector<16x128xf32> to vector<16x128xbf16>
      %c0_18 = arith.constant 0 : index
      %c0_19 = arith.constant 0 : index
      %30 = vector.load %arg6[%c0_18, %c0_19] : memref<16x128xbf16, #tpu.memory_space<vmem>>, vector<16x128xbf16>
      tpu.vector_store %arg6[%c0_18, %c0_19], %29 {strides = array<i32>} : memref<16x128xbf16, #tpu.memory_space<vmem>>, vector<16x128xbf16>,
    } else {
    }
    return
  }
  func.func @transform_0(%arg0: i32, %arg1: i32, %arg2: i32) -> (i32, i32) {
    %c0_i32 = arith.constant 0 : i32
    return %arg0, %arg2 : i32, i32
  }
  func.func @transform_1(%arg0: i32, %arg1: i32, %arg2: i32) -> (i32, i32) {
    %c0_i32 = arith.constant 0 : i32
    return %arg2, %arg1 : i32, i32
  }
  func.func @transform_2(%arg0: i32, %arg1: i32, %arg2: i32) -> (i32, i32) {
    %c0_i32 = arith.constant 0 : i32
    %c0_i32_0 = arith.constant 0 : i32
    return %c0_i32, %arg1 : i32, i32
  }
  func.func @transform_3(%arg0: i32, %arg1: i32, %arg2: i32) -> (i32, i32) {
    %c0_i32 = arith.constant 0 : i32
    return %arg0, %arg1 : i32, i32
  }
}

module attributes {stable_mosaic.version = 11 : i64} {
  func.func @_linear_ln_kernel(%arg0: i32, %arg1: i32, %arg2: memref<8x128xbf16, #tpu.memory_space<vmem>>, %arg3: memref<128x32xbf16, #tpu.memory_space<vmem>>, %arg4: memref<1x32xf32, #tpu.memory_space<vmem>>, %arg5: memref<1x32xf32, #tpu.memory_space<vmem>>, %arg6: memref<1x32xf32, #tpu.memory_space<vmem>>, %arg7: memref<8x32xbf16, #tpu.memory_space<vmem>>, %arg8: memref<8x32xf32, #tpu.memory_space<vmem>>) attributes {dimension_semantics = [#tpu.dimension_semantics<parallel>, #tpu.dimension_semantics<arbitrary>], iteration_bounds = array<i64: 1, 1>, scalar_prefetch = 0 : i64, scratch_operands = 1 : i64, tpu.core_type = #tpu.core_type<tc>, window_params = [{transform_indices = @transform_0, window_bounds = array<i64: 8, 128>}, {transform_indices = @transform_1, window_bounds = array<i64: 128, 32>}, {pipeline_mode = #tpu.pipeline_mode<synchronous>, transform_indices = @transform_2, window_bounds = array<i64: 1, 32>}, {pipeline_mode = #tpu.pipeline_mode<synchronous>, transform_indices = @transform_3, window_bounds = array<i64: 1, 32>}, {pipeline_mode = #tpu.pipeline_mode<synchronous>, transform_indices = @transform_4, window_bounds = array<i64: 1, 32>}, {transform_indices = @transform_5, window_bounds = array<i64: 8, 32>}]} {
    %c0_i32 = arith.constant 0 : i32
    %0 = arith.cmpi eq, %arg1, %c0_i32 : i32
    %1 = arith.extui %0 : i1 to i32
    %c0_i32_0 = arith.constant 0 : i32
    %2 = arith.cmpi ne, %1, %c0_i32_0 : i32
    scf.if %2 {
      %cst_10 = arith.constant 0.000000e+00 : f32
      %12 = vector.broadcast %cst_10 : f32 to vector<8x32xf32>
      %c0_11 = arith.constant 0 : index
      %c0_12 = arith.constant 0 : index
      %13 = vector.load %arg8[%c0_11, %c0_12] : memref<8x32xf32, #tpu.memory_space<vmem>>, vector<8x32xf32>
      tpu.vector_store %arg8[%c0_11, %c0_12], %12 {strides = array<i32>} : memref<8x32xf32, #tpu.memory_space<vmem>>, vector<8x32xf32>,
    } else {
    }
    %c0 = arith.constant 0 : index
    %c0_1 = arith.constant 0 : index
    %3 = vector.load %arg8[%c0, %c0_1] : memref<8x32xf32, #tpu.memory_space<vmem>>, vector<8x32xf32>
    %c0_2 = arith.constant 0 : index
    %c0_3 = arith.constant 0 : index
    %4 = vector.load %arg2[%c0_2, %c0_3] : memref<8x128xbf16, #tpu.memory_space<vmem>>, vector<8x128xbf16>
    %c0_4 = arith.constant 0 : index
    %c0_5 = arith.constant 0 : index
    %5 = vector.load %arg3[%c0_4, %c0_5] : memref<128x32xbf16, #tpu.memory_space<vmem>>, vector<128x32xbf16>
    %cst = arith.constant dense<0.000000e+00> : vector<8x32xf32>
    %6 = tpu.matmul %4, %5, %cst {dimension_numbers = #tpu.dot_dimension_numbers<[1], [0], [0], [1], [0, 0, 1, 1], [], []>} : vector<8x128xbf16>, vector<128x32xbf16>, vector<8x32xf32> -> vector<8x32xf32>
    %7 = arith.addf %3, %6 : vector<8x32xf32>
    %c0_6 = arith.constant 0 : index
    %c0_7 = arith.constant 0 : index
    %8 = vector.load %arg8[%c0_6, %c0_7] : memref<8x32xf32, #tpu.memory_space<vmem>>, vector<8x32xf32>
    tpu.vector_store %arg8[%c0_6, %c0_7], %7 {strides = array<i32>} : memref<8x32xf32, #tpu.memory_space<vmem>>, vector<8x32xf32>,
    %c0_i32_8 = arith.constant 0 : i32
    %9 = arith.cmpi eq, %arg1, %c0_i32_8 : i32
    %10 = arith.extui %9 : i1 to i32
    %c0_i32_9 = arith.constant 0 : i32
    %11 = arith.cmpi ne, %10, %c0_i32_9 : i32
    scf.if %11 {
      %c0_10 = arith.constant 0 : index
      %c0_11 = arith.constant 0 : index
      %12 = vector.load %arg8[%c0_10, %c0_11] : memref<8x32xf32, #tpu.memory_space<vmem>>, vector<8x32xf32>
      %c0_12 = arith.constant 0 : index
      %c0_13 = arith.constant 0 : index
      %13 = vector.load %arg4[%c0_12, %c0_13] : memref<1x32xf32, #tpu.memory_space<vmem>>, vector<1x32xf32>
      %14 = vector.broadcast %13 : vector<1x32xf32> to vector<8x32xf32>
      %15 = arith.addf %12, %14 : vector<8x32xf32>
      %cst_14 = arith.constant 5.000000e-01 : f32
      %16 = vector.broadcast %cst_14 : f32 to vector<8x32xf32>
      %17 = arith.mulf %16, %15 : vector<8x32xf32>
      %cst_15 = arith.constant 4.471500e-02 : f32
      %18 = vector.broadcast %cst_15 : f32 to vector<8x32xf32>
      %19 = arith.mulf %18, %15 : vector<8x32xf32>
      %20 = arith.mulf %19, %15 : vector<8x32xf32>
      %21 = arith.mulf %20, %15 : vector<8x32xf32>
      %22 = arith.addf %15, %21 : vector<8x32xf32>
      %cst_16 = arith.constant 0.797884583 : f32
      %23 = vector.broadcast %cst_16 : f32 to vector<8x32xf32>
      %24 = arith.mulf %23, %22 : vector<8x32xf32>
      %25 = math.tanh %24 : vector<8x32xf32>
      %cst_17 = arith.constant 1.000000e+00 : f32
      %26 = vector.broadcast %cst_17 : f32 to vector<8x32xf32>
      %27 = arith.addf %26, %25 : vector<8x32xf32>
      %28 = arith.mulf %17, %27 : vector<8x32xf32>
      %cst_18 = arith.constant dense<0.000000e+00> : vector<8xf32>
      %29 = vector.multi_reduction <add>, %28, %cst_18 [1] : vector<8x32xf32> to vector<8xf32>
      %30 = vector.shape_cast %29 : vector<8xf32> to vector<8x1xf32>
      %cst_19 = arith.constant 3.200000e+01 : f32
      %31 = vector.broadcast %cst_19 : f32 to vector<8x1xf32>
      %32 = arith.divf %30, %31 : vector<8x1xf32>
      %33 = vector.broadcast %32 : vector<8x1xf32> to vector<8x32xf32>
      %34 = arith.subf %28, %33 : vector<8x32xf32>
      %35 = arith.mulf %34, %34 : vector<8x32xf32>
      %cst_20 = arith.constant dense<0.000000e+00> : vector<8xf32>
      %36 = vector.multi_reduction <add>, %35, %cst_20 [1] : vector<8x32xf32> to vector<8xf32>
      %37 = vector.shape_cast %36 : vector<8xf32> to vector<8x1xf32>
      %cst_21 = arith.constant 3.200000e+01 : f32
      %38 = vector.broadcast %cst_21 : f32 to vector<8x1xf32>
      %39 = arith.divf %37, %38 : vector<8x1xf32>
      %cst_22 = arith.constant 9.99999996E-13 : f32
      %40 = vector.broadcast %cst_22 : f32 to vector<8x1xf32>
      %41 = arith.addf %39, %40 : vector<8x1xf32>
      %42 = math.rsqrt %41 : vector<8x1xf32>
      %43 = vector.broadcast %42 : vector<8x1xf32> to vector<8x32xf32>
      %44 = arith.mulf %34, %43 : vector<8x32xf32>
      %c0_23 = arith.constant 0 : index
      %c0_24 = arith.constant 0 : index
      %45 = vector.load %arg5[%c0_23, %c0_24] : memref<1x32xf32, #tpu.memory_space<vmem>>, vector<1x32xf32>
      %46 = vector.broadcast %45 : vector<1x32xf32> to vector<8x32xf32>
      %47 = arith.mulf %44, %46 : vector<8x32xf32>
      %c0_25 = arith.constant 0 : index
      %c0_26 = arith.constant 0 : index
      %48 = vector.load %arg6[%c0_25, %c0_26] : memref<1x32xf32, #tpu.memory_space<vmem>>, vector<1x32xf32>
      %49 = vector.broadcast %48 : vector<1x32xf32> to vector<8x32xf32>
      %50 = arith.addf %47, %49 : vector<8x32xf32>
      %51 = arith.truncf %50 : vector<8x32xf32> to vector<8x32xbf16>
      %c0_27 = arith.constant 0 : index
      %c0_28 = arith.constant 0 : index
      %52 = vector.load %arg7[%c0_27, %c0_28] : memref<8x32xbf16, #tpu.memory_space<vmem>>, vector<8x32xbf16>
      tpu.vector_store %arg7[%c0_27, %c0_28], %51 {strides = array<i32>} : memref<8x32xbf16, #tpu.memory_space<vmem>>, vector<8x32xbf16>,
    } else {
    }
    return
  }
  func.func @transform_0(%arg0: i32, %arg1: i32) -> (i32, i32) {
    %c0_i32 = arith.constant 0 : i32
    return %arg0, %arg1 : i32, i32
  }
  func.func @transform_1(%arg0: i32, %arg1: i32) -> (i32, i32) {
    %c0_i32 = arith.constant 0 : i32
    %c0_i32_0 = arith.constant 0 : i32
    return %arg1, %c0_i32 : i32, i32
  }
  func.func @transform_2(%arg0: i32, %arg1: i32) -> (i32, i32) {
    %c0_i32 = arith.constant 0 : i32
    %c0_i32_0 = arith.constant 0 : i32
    %c0_i32_1 = arith.constant 0 : i32
    return %c0_i32, %c0_i32_0 : i32, i32
  }
  func.func @transform_3(%arg0: i32, %arg1: i32) -> (i32, i32) {
    %c0_i32 = arith.constant 0 : i32
    %c0_i32_0 = arith.constant 0 : i32
    %c0_i32_1 = arith.constant 0 : i32
    return %c0_i32, %c0_i32_0 : i32, i32
  }
  func.func @transform_4(%arg0: i32, %arg1: i32) -> (i32, i32) {
    %c0_i32 = arith.constant 0 : i32
    %c0_i32_0 = arith.constant 0 : i32
    %c0_i32_1 = arith.constant 0 : i32
    return %c0_i32, %c0_i32_0 : i32, i32
  }
  func.func @transform_5(%arg0: i32, %arg1: i32) -> (i32, i32) {
    %c0_i32 = arith.constant 0 : i32
    %c0_i32_0 = arith.constant 0 : i32
    return %arg0, %c0_i32 : i32, i32
  }
}

module attributes {stable_mosaic.version = 11 : i64} {
  func.func @_linear_kernel(%arg0: i32, %arg1: i32, %arg2: i32, %arg3: memref<8x128xbf16, #tpu.memory_space<vmem>>, %arg4: memref<128x128xbf16, #tpu.memory_space<vmem>>, %arg5: memref<1x128xf32, #tpu.memory_space<vmem>>, %arg6: memref<8x128xf32, #tpu.memory_space<vmem>>, %arg7: memref<8x128xf32, #tpu.memory_space<vmem>>) attributes {dimension_semantics = [#tpu.dimension_semantics<parallel>, #tpu.dimension_semantics<parallel>, #tpu.dimension_semantics<arbitrary>], iteration_bounds = array<i64: 1, 1, 1>, scalar_prefetch = 0 : i64, scratch_operands = 1 : i64, tpu.core_type = #tpu.core_type<tc>, window_params = [{transform_indices = @transform_0, window_bounds = array<i64: 8, 128>}, {transform_indices = @transform_1, window_bounds = array<i64: 128, 128>}, {transform_indices = @transform_2, window_bounds = array<i64: 1, 128>}, {transform_indices = @transform_3, window_bounds = array<i64: 8, 128>}]} {
    %c0_i32 = arith.constant 0 : i32
    %0 = arith.cmpi eq, %arg2, %c0_i32 : i32
    %1 = arith.extui %0 : i1 to i32
    %c0_i32_0 = arith.constant 0 : i32
    %2 = arith.cmpi ne, %1, %c0_i32_0 : i32
    scf.if %2 {
      %cst_10 = arith.constant 0.000000e+00 : f32
      %12 = vector.broadcast %cst_10 : f32 to vector<8x128xf32>
      %c0_11 = arith.constant 0 : index
      %c0_12 = arith.constant 0 : index
      %13 = vector.load %arg7[%c0_11, %c0_12] : memref<8x128xf32, #tpu.memory_space<vmem>>, vector<8x128xf32>
      tpu.vector_store %arg7[%c0_11, %c0_12], %12 {strides = array<i32>} : memref<8x128xf32, #tpu.memory_space<vmem>>, vector<8x128xf32>,
    } else {
    }
    %c0 = arith.constant 0 : index
    %c0_1 = arith.constant 0 : index
    %3 = vector.load %arg7[%c0, %c0_1] : memref<8x128xf32, #tpu.memory_space<vmem>>, vector<8x128xf32>
    %c0_2 = arith.constant 0 : index
    %c0_3 = arith.constant 0 : index
    %4 = vector.load %arg3[%c0_2, %c0_3] : memref<8x128xbf16, #tpu.memory_space<vmem>>, vector<8x128xbf16>
    %c0_4 = arith.constant 0 : index
    %c0_5 = arith.constant 0 : index
    %5 = vector.load %arg4[%c0_4, %c0_5] : memref<128x128xbf16, #tpu.memory_space<vmem>>, vector<128x128xbf16>
    %cst = arith.constant dense<0.000000e+00> : vector<8x128xf32>
    %6 = tpu.matmul %4, %5, %cst {dimension_numbers = #tpu.dot_dimension_numbers<[1], [0], [0], [1], [0, 0, 1, 1], [], []>} : vector<8x128xbf16>, vector<128x128xbf16>, vector<8x128xf32> -> vector<8x128xf32>
    %7 = arith.addf %3, %6 : vector<8x128xf32>
    %c0_6 = arith.constant 0 : index
    %c0_7 = arith.constant 0 : index
    %8 = vector.load %arg7[%c0_6, %c0_7] : memref<8x128xf32, #tpu.memory_space<vmem>>, vector<8x128xf32>
    tpu.vector_store %arg7[%c0_6, %c0_7], %7 {strides = array<i32>} : memref<8x128xf32, #tpu.memory_space<vmem>>, vector<8x128xf32>,
    %c0_i32_8 = arith.constant 0 : i32
    %9 = arith.cmpi eq, %arg2, %c0_i32_8 : i32
    %10 = arith.extui %9 : i1 to i32
    %c0_i32_9 = arith.constant 0 : i32
    %11 = arith.cmpi ne, %10, %c0_i32_9 : i32
    scf.if %11 {
      %c0_10 = arith.constant 0 : index
      %c0_11 = arith.constant 0 : index
      %12 = vector.load %arg7[%c0_10, %c0_11] : memref<8x128xf32, #tpu.memory_space<vmem>>, vector<8x128xf32>
      %c0_12 = arith.constant 0 : index
      %c0_13 = arith.constant 0 : index
      %13 = vector.load %arg5[%c0_12, %c0_13] : memref<1x128xf32, #tpu.memory_space<vmem>>, vector<1x128xf32>
      %14 = vector.broadcast %13 : vector<1x128xf32> to vector<8x128xf32>
      %15 = arith.addf %12, %14 : vector<8x128xf32>
      %c0_14 = arith.constant 0 : index
      %c0_15 = arith.constant 0 : index
      %16 = vector.load %arg6[%c0_14, %c0_15] : memref<8x128xf32, #tpu.memory_space<vmem>>, vector<8x128xf32>
      tpu.vector_store %arg6[%c0_14, %c0_15], %15 {strides = array<i32>} : memref<8x128xf32, #tpu.memory_space<vmem>>, vector<8x128xf32>,
    } else {
    }
    return
  }
  func.func @transform_0(%arg0: i32, %arg1: i32, %arg2: i32) -> (i32, i32) {
    %c0_i32 = arith.constant 0 : i32
    return %arg0, %arg2 : i32, i32
  }
  func.func @transform_1(%arg0: i32, %arg1: i32, %arg2: i32) -> (i32, i32) {
    %c0_i32 = arith.constant 0 : i32
    return %arg2, %arg1 : i32, i32
  }
  func.func @transform_2(%arg0: i32, %arg1: i32, %arg2: i32) -> (i32, i32) {
    %c0_i32 = arith.constant 0 : i32
    %c0_i32_0 = arith.constant 0 : i32
    return %c0_i32, %arg1 : i32, i32
  }
  func.func @transform_3(%arg0: i32, %arg1: i32, %arg2: i32) -> (i32, i32) {
    %c0_i32 = arith.constant 0 : i32
    return %arg0, %arg1 : i32, i32
  }
}

</mosaic_0001>

<llo_original>
// kernel: bert_prompt_forward.13
$region0: #{bert_prompt_forward.13}
  #allocation0 [shape = 'u32[]', space=smem, size = 0x4, offset = 0x4, fixed_abs, tag = 'smem constant byte address 0x4 - core index']
  #allocation1 [shape = 'u32[72,128]{1,0:T(1,128)}', space=vmem, size = 0x9000, scoped, tag = 'internal scratch']
  %s0 = inlined_call_operand.vmem [shape: f32[16,32], index: 0, kind: input, shape index: {}]
  %s1 = inlined_call_operand.vmem [shape: f32[1,32], index: 1, kind: input, shape index: {}]
  %s2 = inlined_call_operand.vmem [shape: f32[1,32], index: 2, kind: input, shape index: {}]
  %s3 = inlined_call_operand.vmem [shape: bf16[16,32], index: 3, kind: output, shape index: {}]
  %s4 = sld [smem:[#allocation0]]
  $region22: #{bert_prompt_forward.13} parent=0
    _
  %s6 = ssub.s32 1, %s4
  %s7 = scalar_select 0, %s6, %s4
  // Predicated region
  $region2: #{bert_prompt_forward.13} parent=0 // pred_check
    _
  $region3: #{bert_prompt_forward.13} parent=0 // pred_check_branch
    %9 = sbr.rel (0) target = $region5
  $region4: #{bert_prompt_forward.13} parent=0 // pred_region
    _
  $region5: #{bert_prompt_forward.13} parent=0 // pred_fallthru
    _
  // Predicated region
  $region6: #{bert_prompt_forward.13} parent=0 // pred_check
    _
  $region7: #{bert_prompt_forward.13} parent=0 // pred_check_branch
    %11 = sbr.rel (0) target = $region9
  $region8: #{bert_prompt_forward.13} parent=0 // pred_region
    _
  $region9: #{bert_prompt_forward.13} parent=0 // pred_fallthru
    _
  // Predicated region
  $region10: #{bert_prompt_forward.13} parent=0 // pred_check
    _
  $region11: #{bert_prompt_forward.13} parent=0 // pred_check_branch
    %13 = sbr.rel (0) target = $region13
  $region12: #{bert_prompt_forward.13} parent=0 // pred_region
    _
  $region13: #{bert_prompt_forward.13} parent=0 // pred_fallthru
    _
  %v14 = vld [vmem:[%s0] sm:$0xff]
  %v15 = vld [vmem:[%s0 + $0x8] sm:$0xff]
  %vm16 = vcmask 261120
  %v17 = vsel %vm16, %v14, 0.0
  %18 = vadd.xlane.f32.xlu0 %v17
  %v19 = vpop.xlane.xlu0 %18
  %v20 = vsel %vm16, %v15, 0.0
  %21 = vadd.xlane.f32.xlu0 %v20
  %v22 = vpop.xlane.xlu0 %21
  %v23 = vrcp.pop 32.0
  %v24 = vmul.f32 32.0, %v23
  %v25 = vsub.f32 1.0, %v24
  %v26 = vmul.f32 %v23, %v25
  %v27 = vadd.f32 %v23, %v26
  %vm28 = vweird.f32 %v23
  %v29 = vsel %vm28, %v23, %v27
  %v30 = vmul.f32 %v19, %v29
  %v31 = vmul.f32 %v22, %v29
  %v32 = vsub.f32 %v14, %v30
  %v33 = vsub.f32 %v15, %v31
  %v34 = vmul.f32 %v32, %v32
  %v35 = vmul.f32 %v33, %v33
  %v36 = vsel %vm16, %v34, 0.0
  %37 = vadd.xlane.f32.xlu0 %v36
  %v38 = vpop.xlane.xlu0 %37
  %v39 = vsel %vm16, %v35, 0.0
  %40 = vadd.xlane.f32.xlu0 %v39
  %v41 = vpop.xlane.xlu0 %40
  %v42 = vmul.f32 %v38, %v29
  %v43 = vmul.f32 %v41, %v29
  %v44 = vadd.f32 %v42, 1e-12
  %v45 = vadd.f32 %v43, 1e-12
  %v46 = vrsqrt.pop %v44
  %v47 = vmul.f32 %v46, %v44
  %v48 = vmul.f32 %v47, %v46
  %v49 = vmul.f32 0.5, %v48
  %v50 = vsub.f32 1.5, %v49
  %v51 = vmul.f32 %v46, %v50
  %vm52 = vweird.f32 %v44
  %vm53 = vweird.f32 %v46
  %vm54 = vmor %vm52, %vm53
  %v55 = vsel %vm54, %v46, %v51
  %v56 = vrsqrt.pop %v45
  %v57 = vmul.f32 %v56, %v45
  %v58 = vmul.f32 %v57, %v56
  %v59 = vmul.f32 0.5, %v58
  %v60 = vsub.f32 1.5, %v59
  %v61 = vmul.f32 %v56, %v60
  %vm62 = vweird.f32 %v45
  %vm63 = vweird.f32 %v56
  %vm64 = vmor %vm62, %vm63
  %v65 = vsel %vm64, %v56, %v61
  %v66 = vmul.f32 %v32, %v55
  %v67 = vmul.f32 %v33, %v65
  %v68 = vld [vmem:[%s1] sm:$0x1]
  %v70 = vperm.slane %v68, 0
  %v72 = vmul.f32 %v66, %v70
  %v73 = vmul.f32 %v67, %v70
  %v74 = vld [vmem:[%s2] sm:$0x1]
  %v76 = vperm.slane %v74, 0
  %v78 = vadd.f32 %v72, %v76
  %v79 = vadd.f32 %v73, %v76
  %v80 = vpack.c.bf16 %v78, %v78
  %v81 = vpack.c.bf16 %v79, %v79
  %vm82 = vcmask 257024
  %83 = vst.msk [vmem:[%s3] sm:$0xf] %vm82, %v80
  %84 = vst.msk [vmem:[%s3 + $0x4] sm:$0xf] %vm82, %v81
  // Predicated region
  $region14: #{bert_prompt_forward.13} parent=0 // pred_check
    _
  $region15: #{bert_prompt_forward.13} parent=0 // pred_check_branch
    %86 = sbr.rel (0) target = $region17
  $region16: #{bert_prompt_forward.13} parent=0 // pred_region
    _
  $region17: #{bert_prompt_forward.13} parent=0 // pred_fallthru
    _
  // Predicated region
  $region18: #{bert_prompt_forward.13} parent=0 // pred_check
    _
  $region19: #{bert_prompt_forward.13} parent=0 // pred_check_branch
    %88 = sbr.rel (0) target = $region21
  $region20: #{bert_prompt_forward.13} parent=0 // pred_region
    _
  $region21: #{bert_prompt_forward.13} parent=0 // pred_fallthru
    _

// kernel: bert_prompt_forward.14
$region0: #{bert_prompt_forward.14}
  #allocation0 [shape = 'u32[]', space=smem, size = 0x4, offset = 0x4, fixed_abs, tag = 'smem constant byte address 0x4 - core index']
  #allocation1 [shape = 'u32[72,128]{1,0:T(1,128)}', space=vmem, size = 0x9000, scoped, tag = 'internal scratch']
  #allocation2 [shape = 'f32[16,128]{1,0:T(8,128)}', space=vmem, size = 0x2000, scoped, tag = 'scratch operand']
  %s0 = inlined_call_operand.vmem [shape: bf16[16,128], index: 0, kind: input, shape index: {}]
  %s1 = inlined_call_operand.vmem [shape: bf16[128,128], index: 1, kind: input, shape index: {}]
  %s2 = inlined_call_operand.vmem [shape: f32[1,128], index: 2, kind: input, shape index: {}]
  %s3 = inlined_call_operand.vmem [shape: bf16[16,128], index: 3, kind: output, shape index: {}]
  %s4 = sld [smem:[#allocation0]]
  $region30: #{bert_prompt_forward.14} parent=0
    _
  %s6 = ssub.s32 1, %s4
  %s7 = scalar_select 0, %s6, %s4
  // Predicated region
  $region2: #{bert_prompt_forward.14} parent=0 // pred_check
    _
  $region3: #{bert_prompt_forward.14} parent=0 // pred_check_branch
    %9 = sbr.rel (0) target = $region5
  $region4: #{bert_prompt_forward.14} parent=0 // pred_region
    _
  $region5: #{bert_prompt_forward.14} parent=0 // pred_fallthru
    _
  // Predicated region
  $region6: #{bert_prompt_forward.14} parent=0 // pred_check
    _
  $region7: #{bert_prompt_forward.14} parent=0 // pred_check_branch
    %11 = sbr.rel (0) target = $region9
  $region8: #{bert_prompt_forward.14} parent=0 // pred_region
    _
  $region9: #{bert_prompt_forward.14} parent=0 // pred_fallthru
    _
  // Predicated region
  $region10: #{bert_prompt_forward.14} parent=0 // pred_check
    _
  $region11: #{bert_prompt_forward.14} parent=0 // pred_check_branch
    %13 = sbr.rel (0) target = $region13
  $region12: #{bert_prompt_forward.14} parent=0 // pred_region
    _
  $region13: #{bert_prompt_forward.14} parent=0 // pred_fallthru
    _
  %p14 = scmp.eq.s32.totalorder 0, 0
  // Predicated region
  $region14: #{bert_prompt_forward.14} parent=0 // pred_check
    %p15 = pneg %p14
  $region15: #{bert_prompt_forward.14} parent=0 // pred_check_branch
    %17 = sbr.rel (%p15) target = $region17
  $region16: #{bert_prompt_forward.14} parent=0 // pred_region
    %18 = vst [vmem:[#allocation2] sm:$0xff] 0.0
    %19 = vst [vmem:[#allocation2 + $0x8] sm:$0xff] 0.0
  $region17: #{bert_prompt_forward.14} parent=0 // pred_fallthru
    _
  %v20 = vld [vmem:[#allocation2] sm:$0xff]
  %v21 = vld [vmem:[#allocation2 + $0x8] sm:$0xff]
  %v22 = vld [vmem:[%s0] sm:$0xf]
  %v23 = vld [vmem:[%s0 + $0x4] sm:$0xf]
  %v24 = vld [vmem:[%s1] sm:$0xf]
  %v25 = vld [vmem:[%s1 + $0x4] sm:$0xf]
  %v26 = vld [vmem:[%s1 + $0x8] sm:$0xf]
  %v27 = vld [vmem:[%s1 + $0xc] sm:$0xf]
  %v28 = vld [vmem:[%s1 + $0x10] sm:$0xf]
  %v29 = vld [vmem:[%s1 + $0x14] sm:$0xf]
  %v30 = vld [vmem:[%s1 + $0x18] sm:$0xf]
  %v31 = vld [vmem:[%s1 + $0x1c] sm:$0xf]
  %v32 = vld [vmem:[%s1 + $0x20] sm:$0xf]
  %v33 = vld [vmem:[%s1 + $0x24] sm:$0xf]
  %v34 = vld [vmem:[%s1 + $0x28] sm:$0xf]
  %v35 = vld [vmem:[%s1 + $0x2c] sm:$0xf]
  %v36 = vld [vmem:[%s1 + $0x30] sm:$0xf]
  %v37 = vld [vmem:[%s1 + $0x34] sm:$0xf]
  %v38 = vld [vmem:[%s1 + $0x38] sm:$0xf]
  %v39 = vld [vmem:[%s1 + $0x3c] sm:$0xf]
  %v42 = vunpack.c.l.b16 %v22
  %v43 = vunpack.c.l.b16 %v23
  %v44 = vpack.c.b16 %v43, %v42
  %v62 = vunpack.c.l.b16 %v24
  %v63 = vunpack.c.l.b16 %v25
  %v64 = vunpack.c.l.b16 %v26
  %v65 = vunpack.c.l.b16 %v27
  %v66 = vunpack.c.l.b16 %v28
  %v67 = vunpack.c.l.b16 %v29
  %v68 = vunpack.c.l.b16 %v30
  %v69 = vunpack.c.l.b16 %v31
  %v70 = vunpack.c.l.b16 %v32
  %v71 = vunpack.c.l.b16 %v33
  %v72 = vunpack.c.l.b16 %v34
  %v73 = vunpack.c.l.b16 %v35
  %v74 = vunpack.c.l.b16 %v36
  %v75 = vunpack.c.l.b16 %v37
  %v76 = vunpack.c.l.b16 %v38
  %v77 = vunpack.c.l.b16 %v39
  %v78 = vpack.c.b16 %v63, %v62
  %v79 = vpack.c.b16 %v65, %v64
  %v80 = vpack.c.b16 %v67, %v66
  %v81 = vpack.c.b16 %v69, %v68
  %v82 = vpack.c.b16 %v71, %v70
  %v83 = vpack.c.b16 %v73, %v72
  %v84 = vpack.c.b16 %v75, %v74
  %v85 = vpack.c.b16 %v77, %v76
  %94 = vmatpush.bf16.msra.mxu0 %v85
  %95 = vmatpush.bf16.msra.mxu0 %v84
  %96 = vmatpush.bf16.msra.mxu0 %v83
  %97 = vmatpush.bf16.msra.mxu0 %v82
  %98 = vmatpush.bf16.msra.mxu0 %v81
  %99 = vmatpush.bf16.msra.mxu0 %v80
  %100 = vmatpush.bf16.msra.mxu0 %v79
  %101 = vmatpush.bf16.msra.mxu0 %v78
  %102 = vmatmul.bf16.gmra.mxu0 %v44
  %v103 = vpop.f32.mrf.mxu0
  %v104 = vadd.f32 0.0, %v103
  %v105 = vpop.f32.mrf.mxu0
  %v106 = vadd.f32 0.0, %v105
  %107 = vdwg.mxu0
  %v108 = vadd.f32 %v20, %v104
  %v109 = vadd.f32 %v21, %v106
  %110 = vst [vmem:[#allocation2] sm:$0xff] %v108
  %111 = vst [vmem:[#allocation2 + $0x8] sm:$0xff] %v109
  // Predicated region
  $region18: #{bert_prompt_forward.14} parent=0 // pred_check
    %p112 = pneg %p14
  $region19: #{bert_prompt_forward.14} parent=0 // pred_check_branch
    %114 = sbr.rel (%p112) target = $region21
  $region20: #{bert_prompt_forward.14} parent=0 // pred_region
    %v115 = vld [vmem:[#allocation2] sm:$0xff]
    %v116 = vld [vmem:[#allocation2 + $0x8] sm:$0xff]
    %v117 = vld [vmem:[%s2] sm:$0x1]
    %v119 = vperm.slane %v117, 0
    %v121 = vadd.f32 %v115, %v119
    %v122 = vadd.f32 %v116, %v119
    %v123 = vpack.c.bf16 %v121, %v121
    %v124 = vpack.c.bf16 %v122, %v122
    %125 = vst [vmem:[%s3] sm:$0xf] %v123
    %126 = vst [vmem:[%s3 + $0x4] sm:$0xf] %v124
  $region21: #{bert_prompt_forward.14} parent=0 // pred_fallthru
    _
  // Predicated region
  $region22: #{bert_prompt_forward.14} parent=0 // pred_check
    _
  $region23: #{bert_prompt_forward.14} parent=0 // pred_check_branch
    %128 = sbr.rel (0) target = $region25
  $region24: #{bert_prompt_forward.14} parent=0 // pred_region
    _
  $region25: #{bert_prompt_forward.14} parent=0 // pred_fallthru
    _
  // Predicated region
  $region26: #{bert_prompt_forward.14} parent=0 // pred_check
    _
  $region27: #{bert_prompt_forward.14} parent=0 // pred_check_branch
    %130 = sbr.rel (0) target = $region29
  $region28: #{bert_prompt_forward.14} parent=0 // pred_region
    _
  $region29: #{bert_prompt_forward.14} parent=0 // pred_fallthru
    _

// kernel: bert_prompt_forward.15
$region0: #{bert_prompt_forward.15}
  #allocation0 [shape = 'u32[]', space=smem, size = 0x4, offset = 0x4, fixed_abs, tag = 'smem constant byte address 0x4 - core index']
  #allocation1 [shape = 'u32[72,128]{1,0:T(1,128)}', space=vmem, size = 0x9000, scoped, tag = 'internal scratch']
  %s0 = inlined_call_operand.vmem [shape: bf16[2,8,32], index: 0, kind: input, shape index: {}]
  %s1 = inlined_call_operand.vmem [shape: bf16[2,8,32], index: 1, kind: input, shape index: {}]
  %s2 = inlined_call_operand.vmem [shape: bf16[2,8,32], index: 2, kind: input, shape index: {}]
  %s3 = inlined_call_operand.vmem [shape: f32[2,1,8], index: 3, kind: input, shape index: {}]
  %s4 = inlined_call_operand.vmem [shape: bf16[2,8,32], index: 4, kind: output, shape index: {}]
  %s5 = sld [smem:[#allocation0]]
  $region49: #{bert_prompt_forward.15} parent=0
    _
  %s7 = ssub.s32 1, %s5
  %s8 = scalar_select 0, %s7, %s5
  loop: start=0, step=1, limit=4
  $region2: #{bert_prompt_forward.15} parent=0 // loop_pre_header
    _
  $region3: #{bert_prompt_forward.15} parent=0 // loop_header
    %s10 = sphi 0, %s14
    %p11 = scmp.ge.s32.totalorder %s10, 4
    %s17 = sphi 0, %s29
    %s18 = sphi 0, %s25
    %s19 = sphi 0, %s17
    %s20 = sphi 0, %s18
    %s21 = sphi 0, %s19
    %s22 = sphi 0, %s20
    %s34 = sphi 0, %s36
    %s37 = sphi 0, %s34
    %s38 = sphi 0, %s37
    %s54 = sphi 0, %s38
    %s60 = sphi 0, %s62
    %s63 = sphi 0, %s60
    %s64 = sphi 0, %s63
    %s80 = sphi 0, %s64
    %s86 = sphi 0, %s88
    %s89 = sphi 0, %s86
    %s90 = sphi 0, %s89
    %s106 = sphi 0, %s90
    %s112 = sphi 0, %s114
    %s115 = sphi 0, %s112
    %s116 = sphi 0, %s115
    %s132 = sphi 0, %s116
    %s140 = sphi 0, %s142
    %s143 = sphi 0, %s140
    %s144 = sphi 0, %s143
    %s160 = sphi 0, %s144
  $region4: #{bert_prompt_forward.15} parent=0 // loop_header_branch
    %13 = sbr.rel (%p11) target = $region8
  $region5: #{bert_prompt_forward.15} parent=0 // loop_body
    %s15 = ssub.s32 %s10, 1
    %s16 = ssub.s32 %s10, 2
    %s23 = sadd.s32 1, %s18
    %p24 = scmp.ge.s32.totalorder %s23, 1
    %s25 = scalar_select %p24, 0, %s23
    %s26 = sadd.s32 1, %s17
    %s27 = scalar_select %p24, %s26, %s17
    %p28 = scmp.ge.s32.totalorder %s27, 2
    %s29 = scalar_select %p28, 0, %s27
    %s30 = ssub.s32 %s17, %s29
    %s31 = ssub.s32 %s18, %s25
    %s32 = sor.u32 %s30, %s31
    %p33 = scmp.eq.s32.totalorder %s32, 0
    %s35 = sadd.s32 %s34, 1
    %s36 = scalar_select %p33, %s34, %s35
    %p39 = pneg %p33
    %p40 = scmp.eq.s32.totalorder %s10, 1
    %p41 = por %p39, %p40
    %p42 = scmp.ne.s32.totalorder %s34, %s37
    %p43 = scmp.eq.s32.totalorder %s10, 0
    %p44 = por %p42, %p43
    %p45 = scmp.ne.s32.totalorder %s34, %s37
    %p46 = scmp.eq.s32.totalorder %s15, 1
    %p47 = por %p45, %p46
    %p48 = scmp.ne.s32.totalorder %s37, %s38
    %p49 = scmp.eq.s32.totalorder %s15, 0
    %p50 = por %p48, %p49
    %p51 = scmp.ne.s32.totalorder %s37, %s38
    %p52 = scmp.eq.s32.totalorder %s16, 1
    %p53 = por %p51, %p52
    %p55 = scmp.ne.s32.totalorder %s38, %s54
    %p56 = scmp.eq.s32.totalorder %s16, 0
    %p57 = por %p55, %p56
    %s58 = ssub.s32 %s17, %s29
    %p59 = scmp.eq.s32.totalorder %s58, 0
    %s61 = sadd.s32 %s60, 1
    %s62 = scalar_select %p59, %s60, %s61
    %p65 = pneg %p59
    %p66 = scmp.eq.s32.totalorder %s10, 1
    %p67 = por %p65, %p66
    %p68 = scmp.ne.s32.totalorder %s60, %s63
    %p69 = scmp.eq.s32.totalorder %s10, 0
    %p70 = por %p68, %p69
    %p71 = scmp.ne.s32.totalorder %s60, %s63
    %p72 = scmp.eq.s32.totalorder %s15, 1
    %p73 = por %p71, %p72
    %p74 = scmp.ne.s32.totalorder %s63, %s64
    %p75 = scmp.eq.s32.totalorder %s15, 0
    %p76 = por %p74, %p75
    %p77 = scmp.ne.s32.totalorder %s63, %s64
    %p78 = scmp.eq.s32.totalorder %s16, 1
    %p79 = por %p77, %p78
    %p81 = scmp.ne.s32.totalorder %s64, %s80
    %p82 = scmp.eq.s32.totalorder %s16, 0
    %p83 = por %p81, %p82
    %s84 = ssub.s32 %s17, %s29
    %p85 = scmp.eq.s32.totalorder %s84, 0
    %s87 = sadd.s32 %s86, 1
    %s88 = scalar_select %p85, %s86, %s87
    %p91 = pneg %p85
    %p92 = scmp.eq.s32.totalorder %s10, 1
    %p93 = por %p91, %p92
    %p94 = scmp.ne.s32.totalorder %s86, %s89
    %p95 = scmp.eq.s32.totalorder %s10, 0
    %p96 = por %p94, %p95
    %p97 = scmp.ne.s32.totalorder %s86, %s89
    %p98 = scmp.eq.s32.totalorder %s15, 1
    %p99 = por %p97, %p98
    %p100 = scmp.ne.s32.totalorder %s89, %s90
    %p101 = scmp.eq.s32.totalorder %s15, 0
    %p102 = por %p100, %p101
    %p103 = scmp.ne.s32.totalorder %s89, %s90
    %p104 = scmp.eq.s32.totalorder %s16, 1
    %p105 = por %p103, %p104
    %p107 = scmp.ne.s32.totalorder %s90, %s106
    %p108 = scmp.eq.s32.totalorder %s16, 0
    %p109 = por %p107, %p108
    %s110 = ssub.s32 %s17, %s29
    %p111 = scmp.eq.s32.totalorder %s110, 0
    %s113 = sadd.s32 %s112, 1
    %s114 = scalar_select %p111, %s112, %s113
    %p117 = pneg %p111
    %p118 = scmp.eq.s32.totalorder %s10, 1
    %p119 = por %p117, %p118
    %p120 = scmp.ne.s32.totalorder %s112, %s115
    %p121 = scmp.eq.s32.totalorder %s10, 0
    %p122 = por %p120, %p121
    %p123 = scmp.ne.s32.totalorder %s112, %s115
    %p124 = scmp.eq.s32.totalorder %s15, 1
    %p125 = por %p123, %p124
    %p126 = scmp.ne.s32.totalorder %s115, %s116
    %p127 = scmp.eq.s32.totalorder %s15, 0
    %p128 = por %p126, %p127
    %p129 = scmp.ne.s32.totalorder %s115, %s116
    %p130 = scmp.eq.s32.totalorder %s16, 1
    %p131 = por %p129, %p130
    %p133 = scmp.ne.s32.totalorder %s116, %s132
    %p134 = scmp.eq.s32.totalorder %s16, 0
    %p135 = por %p133, %p134
    %s136 = ssub.s32 %s17, %s29
    %s137 = ssub.s32 %s18, %s25
    %s138 = sor.u32 %s136, %s137
    %p139 = scmp.eq.s32.totalorder %s138, 0
    %s141 = sadd.s32 %s140, 1
    %s142 = scalar_select %p139, %s140, %s141
    %p145 = pneg %p139
    %p146 = scmp.eq.s32.totalorder %s10, 1
    %p147 = por %p145, %p146
    %p148 = scmp.ne.s32.totalorder %s140, %s143
    %p149 = scmp.eq.s32.totalorder %s10, 0
    %p150 = por %p148, %p149
    %p151 = scmp.ne.s32.totalorder %s140, %s143
    %p152 = scmp.eq.s32.totalorder %s15, 1
    %p153 = por %p151, %p152
    %p154 = scmp.ne.s32.totalorder %s143, %s144
    %p155 = scmp.eq.s32.totalorder %s15, 0
    %p156 = por %p154, %p155
    %p157 = scmp.ne.s32.totalorder %s143, %s144
    %p158 = scmp.eq.s32.totalorder %s16, 1
    %p159 = por %p157, %p158
    %p161 = scmp.ne.s32.totalorder %s144, %s160
    %p162 = scmp.eq.s32.totalorder %s16, 0
    %p163 = por %p161, %p162
    %p164 = scmp.le.s32.totalorder 1, %s10
    %p165 = scmp.lt.s32.totalorder %s10, 3
    %p166 = pnand %p164, %p165
    %p167 = pneg %p166
    // Predicated region
    $region9: #{bert_prompt_forward.15} parent=5 // pred_check
      _
    $region10: #{bert_prompt_forward.15} parent=5 // pred_check_branch
      %169 = sbr.rel (%p166) target = $region12
    $region11: #{bert_prompt_forward.15} parent=5 // pred_region
      %s170 = ssub.s32 %s10, 1
    $region12: #{bert_prompt_forward.15} parent=5 // pred_fallthru
      _
    %p171 = scmp.lt.s32.totalorder %s10, 2
    // Predicated region
    $region13: #{bert_prompt_forward.15} parent=5 // pred_check
      %p172 = pneg %p171
    $region14: #{bert_prompt_forward.15} parent=5 // pred_check_branch
      %174 = sbr.rel (%p172) target = $region16
    $region15: #{bert_prompt_forward.15} parent=5 // pred_region
      // Predicated region
      $region17: #{bert_prompt_forward.15} parent=15 // pred_check
        %p175 = pneg %p44
      $region18: #{bert_prompt_forward.15} parent=15 // pred_check_branch
        %177 = sbr.rel (%p175) target = $region20
      $region19: #{bert_prompt_forward.15} parent=15 // pred_region
        %p178 = scmp.lt.s32.totalorder %s17, 1
        %s179 = scalar_select %p178, %s17, 1
        %p180 = scmp.lt.s32.totalorder %s18, 0
        %s181 = scalar_select %p180, %s18, 0
        %s182 = sadd.s32 %s181, %s179
        %s183 = smul.addr %s182, 4
        %s184 = scalar_lea.vmem %s0, %s183
      $region20: #{bert_prompt_forward.15} parent=15 // pred_fallthru
        _
      // Predicated region
      $region21: #{bert_prompt_forward.15} parent=15 // pred_check
        %p185 = pneg %p70
      $region22: #{bert_prompt_forward.15} parent=15 // pred_check_branch
        %187 = sbr.rel (%p185) target = $region24
      $region23: #{bert_prompt_forward.15} parent=15 // pred_region
        %p188 = scmp.lt.s32.totalorder %s17, 1
        %s189 = scalar_select %p188, %s17, 1
        %s190 = smul.addr %s189, 4
        %s191 = scalar_lea.vmem %s1, %s190
      $region24: #{bert_prompt_forward.15} parent=15 // pred_fallthru
        _
      // Predicated region
      $region25: #{bert_prompt_forward.15} parent=15 // pred_check
        %p192 = pneg %p96
      $region26: #{bert_prompt_forward.15} parent=15 // pred_check_branch
        %194 = sbr.rel (%p192) target = $region28
      $region27: #{bert_prompt_forward.15} parent=15 // pred_region
        %p195 = scmp.lt.s32.totalorder %s17, 1
        %s196 = scalar_select %p195, %s17, 1
        %s197 = smul.addr %s196, 4
        %s198 = scalar_lea.vmem %s2, %s197
      $region28: #{bert_prompt_forward.15} parent=15 // pred_fallthru
        _
      // Predicated region
      $region29: #{bert_prompt_forward.15} parent=15 // pred_check
        %p199 = pneg %p122
      $region30: #{bert_prompt_forward.15} parent=15 // pred_check_branch
        %201 = sbr.rel (%p199) target = $region32
      $region31: #{bert_prompt_forward.15} parent=15 // pred_region
        %p202 = scmp.lt.s32.totalorder %s17, 1
        %s203 = scalar_select %p202, %s17, 1
        %s204 = scalar_lea.vmem %s3, %s203
      $region32: #{bert_prompt_forward.15} parent=15 // pred_fallthru
        _
    $region16: #{bert_prompt_forward.15} parent=5 // pred_fallthru
      _
    %p205 = scmp.le.s32.totalorder 1, %s10
    %p206 = scmp.lt.s32.totalorder %s10, 3
    %p207 = pnand %p205, %p206
    %p208 = pneg %p207
    // Predicated region
    $region33: #{bert_prompt_forward.15} parent=5 // pred_check
      _
    $region34: #{bert_prompt_forward.15} parent=5 // pred_check_branch
      %210 = sbr.rel (%p207) target = $region36
    $region35: #{bert_prompt_forward.15} parent=5 // pred_region
      %s211 = ssub.s32 %s10, 1
      %p212 = scmp.lt.s32.totalorder %s19, 1
      %s213 = scalar_select %p212, %s19, 1
      %p214 = scmp.lt.s32.totalorder %s20, 0
      %s215 = scalar_select %p214, %s20, 0
      %s216 = sadd.s32 %s215, %s213
      %s217 = smul.addr %s216, 4
      %s218 = scalar_lea.vmem %s0, %s217
      %p219 = pneg %p50
      %p220 = pneg %p47
      %p221 = scmp.lt.s32.totalorder %s19, 1
      %s222 = scalar_select %p221, %s19, 1
      %s223 = smul.addr %s222, 4
      %s224 = scalar_lea.vmem %s1, %s223
      %p225 = pneg %p76
      %p226 = pneg %p73
      %p227 = scmp.lt.s32.totalorder %s19, 1
      %s228 = scalar_select %p227, %s19, 1
      %s229 = smul.addr %s228, 4
      %s230 = scalar_lea.vmem %s2, %s229
      %p231 = pneg %p102
      %p232 = pneg %p99
      %p233 = scmp.lt.s32.totalorder %s19, 1
      %s234 = scalar_select %p233, %s19, 1
      %s235 = scalar_lea.vmem %s3, %s234
      %p236 = pneg %p128
      %p237 = pneg %p125
      %p238 = pneg %p156
      %p239 = pneg %p153
      %p240 = scmp.lt.s32.totalorder %s19, 1
      %s241 = scalar_select %p240, %s19, 1
      %p242 = scmp.lt.s32.totalorder %s20, 0
      %s243 = scalar_select %p242, %s20, 0
      %s244 = sadd.s32 %s243, %s241
      %s245 = smul.addr %s244, 4
      %s246 = scalar_lea.vmem %s4, %s245
      %p247 = scmp.lt.s32.totalorder %s19, 1
      %s248 = scalar_select %p247, %s19, 1
      %p249 = scmp.lt.s32.totalorder %s20, 0
      %s250 = scalar_select %p249, %s20, 0
      %s251 = sadd.s32 %s250, %s248
      %s252 = smul.addr %s251, 4
      %s253 = scalar_lea.vmem %s0, %s252
      %p254 = scmp.lt.s32.totalorder %s19, 1
      %s255 = scalar_select %p254, %s19, 1
      %s256 = smul.addr %s255, 4
      %s257 = scalar_lea.vmem %s1, %s256
      %p258 = scmp.lt.s32.totalorder %s19, 1
      %s259 = scalar_select %p258, %s19, 1
      %s260 = smul.addr %s259, 4
      %s261 = scalar_lea.vmem %s2, %s260
      %p262 = scmp.lt.s32.totalorder %s19, 1
      %s263 = scalar_select %p262, %s19, 1
      %s264 = scalar_lea.vmem %s3, %s263
      %p265 = scmp.lt.s32.totalorder %s19, 1
      %s266 = scalar_select %p265, %s19, 1
      %p267 = scmp.lt.s32.totalorder %s20, 0
      %s268 = scalar_select %p267, %s20, 0
      %s269 = sadd.s32 %s268, %s266
      %s270 = smul.addr %s269, 4
      %s271 = scalar_lea.vmem %s4, %s270
      %v273 = vld [vmem:[%s264] sm:$0x1]
      %v274 = vld [vmem:[%s253] sm:$0xf]
      %v275 = vld [vmem:[%s257] sm:$0xf]
      %v276 = vld [vmem:[%s261] sm:$0xf]
      %vm277 = vcmask 130048
      %v279 = vsel %vm277, %v274, 0
      %v282 = vsel %vm277, %v275, 0
      %284 = vmatpush.bf16.xpose.msra.mxu0 0
      %285 = vmatpush.bf16.xpose.msra.mxu0 0
      %286 = vmatpush.bf16.xpose.msra.mxu0 0
      %287 = vmatpush.bf16.xpose.msra.mxu0 0
      %288 = vmatpush.bf16.xpose.msra.mxu0 0
      %289 = vmatpush.bf16.xpose.msra.mxu0 0
      %290 = vmatpush.bf16.xpose.msra.mxu0 0
      %291 = vmatpush.bf16.xpose.msra.mxu0 %v282
      %292 = vmatmul.bf16.gmra.mxu0 %v279
      %v293 = vpop.f32.mrf.mxu0
      %v294 = vadd.f32 0.0, %v293
      %v295 = vpop.f32.mrf.mxu0
      %296 = vdwg.mxu0
      %v297 = vmul.f32 %v294, 0.25
      %v299 = vperm.slane %v273, 0
      %v301 = vadd.f32 %v297, %v299
      %vm302 = vcmask 64512
      %v303 = vsel %vm302, %v301, -inf
      %304 = vmax.xlane.f32.xlu0 %v303
      %v305 = vpop.xlane.xlu0 %304
      %v306 = vsub.f32 %v301, %v305
      %v307 = vmul.f32 %v306, 1.442695
      %v308 = vpow.pop %v307
      %v309 = vsel %vm302, %v308, 0.0
      %310 = vadd.xlane.f32.xlu0 %v309
      %v311 = vpop.xlane.xlu0 %310
      %v312 = vrcp.pop %v311
      %v313 = vmul.f32 %v308, %v312
      %v314 = vpack.c.bf16 %v313, %v313
      %v316 = vsel %vm302, %v314, 0
      %vm318 = vcmask 1043456
      %v320 = vsel %vm318, %v276, 0
      %322 = vmatpush.bf16.msra.mxu0 0
      %323 = vmatpush.bf16.msra.mxu0 0
      %324 = vmatpush.bf16.msra.mxu0 0
      %325 = vmatpush.bf16.msra.mxu0 0
      %326 = vmatpush.bf16.msra.mxu0 0
      %327 = vmatpush.bf16.msra.mxu0 0
      %328 = vmatpush.bf16.msra.mxu0 0
      %329 = vmatpush.bf16.msra.mxu0 %v320
      %330 = vmatmul.bf16.gmra.mxu0 %v316
      %v331 = vpop.f32.mrf.mxu0
      %v332 = vadd.f32 0.0, %v331
      %v333 = vpop.f32.mrf.mxu0
      %334 = vdwg.mxu0
      %v335 = vpack.c.bf16 %v332, %v332
      %vm336 = vcmask 125952
      %337 = vst.msk [vmem:[%s271] sm:$0xf] %vm336, %v335
      %v338 = vld [vmem:[%s253] sm:$0xf]
      %v339 = vld [vmem:[%s257] sm:$0xf]
      %v340 = vld [vmem:[%s261] sm:$0xf]
      %v342 = vunpack.c.l.b16 %v338
      %v343 = vpack.c.b16 %v342, %v342
      %344 = vrot.lane.b32.xlu0 %v343, 112
      %v345 = vpop.permute.xlu0 %344
      %v347 = vunpack.c.l.b16 %v339
      %v348 = vpack.c.b16 %v347, %v347
      %349 = vrot.lane.b32.xlu0 %v348, 112
      %v350 = vpop.permute.xlu0 %349
      %v352 = vsel %vm277, %v345, 0
      %v355 = vsel %vm277, %v350, 0
      %357 = vmatpush.bf16.xpose.msra.mxu0 0
      %358 = vmatpush.bf16.xpose.msra.mxu0 0
      %359 = vmatpush.bf16.xpose.msra.mxu0 0
      %360 = vmatpush.bf16.xpose.msra.mxu0 0
      %361 = vmatpush.bf16.xpose.msra.mxu0 0
      %362 = vmatpush.bf16.xpose.msra.mxu0 0
      %363 = vmatpush.bf16.xpose.msra.mxu0 0
      %364 = vmatpush.bf16.xpose.msra.mxu0 %v355
      %365 = vmatmul.bf16.gmra.mxu0 %v352
      %v366 = vpop.f32.mrf.mxu0
      %v367 = vadd.f32 0.0, %v366
      %v368 = vpop.f32.mrf.mxu0
      %369 = vdwg.mxu0
      %v370 = vmul.f32 %v367, 0.25
      %v371 = vadd.f32 %v370, %v299
      %v372 = vsel %vm302, %v371, -inf
      %373 = vmax.xlane.f32.xlu0 %v372
      %v374 = vpop.xlane.xlu0 %373
      %v375 = vsub.f32 %v371, %v374
      %v376 = vmul.f32 %v375, 1.442695
      %v377 = vpow.pop %v376
      %v378 = vsel %vm302, %v377, 0.0
      %379 = vadd.xlane.f32.xlu0 %v378
      %v380 = vpop.xlane.xlu0 %379
      %v381 = vrcp.pop %v380
      %v382 = vmul.f32 %v377, %v381
      %v383 = vpack.c.bf16 %v382, %v382
      %v385 = vunpack.c.l.b16 %v340
      %v386 = vpack.c.b16 %v385, %v385
      %387 = vrot.lane.b32.xlu0 %v386, 112
      %v388 = vpop.permute.xlu0 %387
      %v390 = vsel %vm302, %v383, 0
      %v393 = vsel %vm318, %v388, 0
      %395 = vmatpush.bf16.msra.mxu0 0
      %396 = vmatpush.bf16.msra.mxu0 0
      %397 = vmatpush.bf16.msra.mxu0 0
      %398 = vmatpush.bf16.msra.mxu0 0
      %399 = vmatpush.bf16.msra.mxu0 0
      %400 = vmatpush.bf16.msra.mxu0 0
      %401 = vmatpush.bf16.msra.mxu0 0
      %402 = vmatpush.bf16.msra.mxu0 %v393
      %403 = vmatmul.bf16.gmra.mxu0 %v390
      %v404 = vpop.f32.mrf.mxu0
      %v405 = vadd.f32 0.0, %v404
      %v406 = vpop.f32.mrf.mxu0
      %407 = vdwg.mxu0
      %v408 = vpack.c.bf16 %v405, %v405
      %410 = vrot.lane.b32.xlu0 %v408, 16
      %v411 = vpop.permute.xlu0 %410
      %vm413 = vcmask 257152
      %414 = vst.msk [vmem:[%s271] sm:$0xf] %vm413, %v411
      %p415 = scmp.lt.s32.totalorder %s19, 1
      %s416 = scalar_select %p415, %s19, 1
      %p417 = scmp.lt.s32.totalorder %s20, 0
      %s418 = scalar_select %p417, %s20, 0
      %s419 = sadd.s32 %s418, %s416
      %s420 = smul.addr %s419, 4
      %s421 = scalar_lea.vmem %s4, %s420
      // Predicated region
      $region37: #{bert_prompt_forward.15} parent=35 // pred_check
        %p422 = pneg %p153
      $region38: #{bert_prompt_forward.15} parent=35 // pred_check_branch
        %424 = sbr.rel (%p422) target = $region40
      $region39: #{bert_prompt_forward.15} parent=35 // pred_region
        _
      $region40: #{bert_prompt_forward.15} parent=35 // pred_fallthru
        _
    $region36: #{bert_prompt_forward.15} parent=5 // pred_fallthru
      _
    %p425 = scmp.le.s32.totalorder 2, %s10
    // Predicated region
    $region41: #{bert_prompt_forward.15} parent=5 // pred_check
      %p426 = pneg %p425
    $region42: #{bert_prompt_forward.15} parent=5 // pred_check_branch
      %428 = sbr.rel (%p426) target = $region44
    $region43: #{bert_prompt_forward.15} parent=5 // pred_region
      %s429 = ssub.s32 %s10, 2
      // Predicated region
      $region45: #{bert_prompt_forward.15} parent=43 // pred_check
        %p430 = pneg %p159
      $region46: #{bert_prompt_forward.15} parent=43 // pred_check_branch
        %432 = sbr.rel (%p430) target = $region48
      $region47: #{bert_prompt_forward.15} parent=43 // pred_region
        %p433 = scmp.lt.s32.totalorder %s21, 1
        %s434 = scalar_select %p433, %s21, 1
        %p435 = scmp.lt.s32.totalorder %s22, 0
        %s436 = scalar_select %p435, %s22, 0
        %s437 = sadd.s32 %s436, %s434
        %s438 = smul.addr %s437, 4
        %s439 = scalar_lea.vmem %s4, %s438
      $region48: #{bert_prompt_forward.15} parent=43 // pred_fallthru
        _
    $region44: #{bert_prompt_forward.15} parent=5 // pred_fallthru
      _
  $region6: #{bert_prompt_forward.15} parent=0 // loop_footer
    %s14 = sadd.s32 1, %s10
  $region7: #{bert_prompt_forward.15} parent=0 // loop_footer_branch
    %9 = sbr.rel target = $region3
  $region8: #{bert_prompt_forward.15} parent=0 // loop_exit
    _

// kernel: bert_prompt_forward.16
$region0: #{bert_prompt_forward.16}
  #allocation0 [shape = 'u32[]', space=smem, size = 0x4, offset = 0x4, fixed_abs, tag = 'smem constant byte address 0x4 - core index']
  #allocation1 [shape = 'u32[72,128]{1,0:T(1,128)}', space=vmem, size = 0x9000, scoped, tag = 'internal scratch']
  #allocation2 [shape = 'f32[16,32]{1,0:T(8,128)}', space=vmem, size = 0x2000, scoped, tag = 'scratch operand']
  %s0 = inlined_call_operand.vmem [shape: bf16[16,128], index: 0, kind: input, shape index: {}]
  %s1 = inlined_call_operand.vmem [shape: bf16[128,32], index: 1, kind: input, shape index: {}]
  %s2 = inlined_call_operand.vmem [shape: f32[1,32], index: 2, kind: input, shape index: {}]
  %s3 = inlined_call_operand.vmem [shape: bf16[16,32], index: 3, kind: input, shape index: {}]
  %s4 = inlined_call_operand.vmem [shape: f32[1,32], index: 4, kind: input, shape index: {}]
  %s5 = inlined_call_operand.vmem [shape: f32[1,32], index: 5, kind: input, shape index: {}]
  %s6 = inlined_call_operand.vmem [shape: bf16[16,32], index: 6, kind: output, shape index: {}]
  %s7 = sld [smem:[#allocation0]]
  $region42: #{bert_prompt_forward.16} parent=0
    _
  %s9 = ssub.s32 1, %s7
  %s10 = scalar_select 0, %s9, %s7
  // Predicated region
  $region2: #{bert_prompt_forward.16} parent=0 // pred_check
    _
  $region3: #{bert_prompt_forward.16} parent=0 // pred_check_branch
    %12 = sbr.rel (0) target = $region5
  $region4: #{bert_prompt_forward.16} parent=0 // pred_region
    _
  $region5: #{bert_prompt_forward.16} parent=0 // pred_fallthru
    _
  // Predicated region
  $region6: #{bert_prompt_forward.16} parent=0 // pred_check
    _
  $region7: #{bert_prompt_forward.16} parent=0 // pred_check_branch
    %14 = sbr.rel (0) target = $region9
  $region8: #{bert_prompt_forward.16} parent=0 // pred_region
    _
  $region9: #{bert_prompt_forward.16} parent=0 // pred_fallthru
    _
  // Predicated region
  $region10: #{bert_prompt_forward.16} parent=0 // pred_check
    _
  $region11: #{bert_prompt_forward.16} parent=0 // pred_check_branch
    %16 = sbr.rel (0) target = $region13
  $region12: #{bert_prompt_forward.16} parent=0 // pred_region
    _
  $region13: #{bert_prompt_forward.16} parent=0 // pred_fallthru
    _
  // Predicated region
  $region14: #{bert_prompt_forward.16} parent=0 // pred_check
    _
  $region15: #{bert_prompt_forward.16} parent=0 // pred_check_branch
    %18 = sbr.rel (0) target = $region17
  $region16: #{bert_prompt_forward.16} parent=0 // pred_region
    _
  $region17: #{bert_prompt_forward.16} parent=0 // pred_fallthru
    _
  // Predicated region
  $region18: #{bert_prompt_forward.16} parent=0 // pred_check
    _
  $region19: #{bert_prompt_forward.16} parent=0 // pred_check_branch
    %20 = sbr.rel (0) target = $region21
  $region20: #{bert_prompt_forward.16} parent=0 // pred_region
    _
  $region21: #{bert_prompt_forward.16} parent=0 // pred_fallthru
    _
  // Predicated region
  $region22: #{bert_prompt_forward.16} parent=0 // pred_check
    _
  $region23: #{bert_prompt_forward.16} parent=0 // pred_check_branch
    %22 = sbr.rel (0) target = $region25
  $region24: #{bert_prompt_forward.16} parent=0 // pred_region
    _
  $region25: #{bert_prompt_forward.16} parent=0 // pred_fallthru
    _
  %p23 = scmp.eq.s32.totalorder 0, 0
  // Predicated region
  $region26: #{bert_prompt_forward.16} parent=0 // pred_check
    %p24 = pneg %p23
  $region27: #{bert_prompt_forward.16} parent=0 // pred_check_branch
    %26 = sbr.rel (%p24) target = $region29
  $region28: #{bert_prompt_forward.16} parent=0 // pred_region
    %vm27 = vcmask 261120
    %28 = vst.msk [vmem:[#allocation2] sm:$0xff] %vm27, 0.0
    %29 = vst.msk [vmem:[#allocation2 + $0x8] sm:$0xff] %vm27, 0.0
  $region29: #{bert_prompt_forward.16} parent=0 // pred_fallthru
    _
  %v30 = vld [vmem:[#allocation2] sm:$0xff]
  %v31 = vld [vmem:[#allocation2 + $0x8] sm:$0xff]
  %v32 = vld [vmem:[%s0] sm:$0xf]
  %v33 = vld [vmem:[%s0 + $0x4] sm:$0xf]
  %v34 = vld [vmem:[%s1] sm:$0xf]
  %v35 = vld [vmem:[%s1 + $0x4] sm:$0xf]
  %v36 = vld [vmem:[%s1 + $0x8] sm:$0xf]
  %v37 = vld [vmem:[%s1 + $0xc] sm:$0xf]
  %v38 = vld [vmem:[%s1 + $0x10] sm:$0xf]
  %v39 = vld [vmem:[%s1 + $0x14] sm:$0xf]
  %v40 = vld [vmem:[%s1 + $0x18] sm:$0xf]
  %v41 = vld [vmem:[%s1 + $0x1c] sm:$0xf]
  %v42 = vld [vmem:[%s1 + $0x20] sm:$0xf]
  %v43 = vld [vmem:[%s1 + $0x24] sm:$0xf]
  %v44 = vld [vmem:[%s1 + $0x28] sm:$0xf]
  %v45 = vld [vmem:[%s1 + $0x2c] sm:$0xf]
  %v46 = vld [vmem:[%s1 + $0x30] sm:$0xf]
  %v47 = vld [vmem:[%s1 + $0x34] sm:$0xf]
  %v48 = vld [vmem:[%s1 + $0x38] sm:$0xf]
  %v49 = vld [vmem:[%s1 + $0x3c] sm:$0xf]
  %v52 = vunpack.c.l.b16 %v32
  %v53 = vunpack.c.l.b16 %v33
  %v54 = vpack.c.b16 %v53, %v52
  %v72 = vunpack.c.l.b16 %v34
  %v73 = vunpack.c.l.b16 %v35
  %v74 = vunpack.c.l.b16 %v36
  %v75 = vunpack.c.l.b16 %v37
  %v76 = vunpack.c.l.b16 %v38
  %v77 = vunpack.c.l.b16 %v39
  %v78 = vunpack.c.l.b16 %v40
  %v79 = vunpack.c.l.b16 %v41
  %v80 = vunpack.c.l.b16 %v42
  %v81 = vunpack.c.l.b16 %v43
  %v82 = vunpack.c.l.b16 %v44
  %v83 = vunpack.c.l.b16 %v45
  %v84 = vunpack.c.l.b16 %v46
  %v85 = vunpack.c.l.b16 %v47
  %v86 = vunpack.c.l.b16 %v48
  %v87 = vunpack.c.l.b16 %v49
  %v88 = vpack.c.b16 %v73, %v72
  %v89 = vpack.c.b16 %v75, %v74
  %v90 = vpack.c.b16 %v77, %v76
  %v91 = vpack.c.b16 %v79, %v78
  %v92 = vpack.c.b16 %v81, %v80
  %v93 = vpack.c.b16 %v83, %v82
  %v94 = vpack.c.b16 %v85, %v84
  %v95 = vpack.c.b16 %v87, %v86
  %104 = vmatpush.bf16.msra.mxu0 %v95
  %105 = vmatpush.bf16.msra.mxu0 %v94
  %106 = vmatpush.bf16.msra.mxu0 %v93
  %107 = vmatpush.bf16.msra.mxu0 %v92
  %108 = vmatpush.bf16.msra.mxu0 %v91
  %109 = vmatpush.bf16.msra.mxu0 %v90
  %110 = vmatpush.bf16.msra.mxu0 %v89
  %111 = vmatpush.bf16.msra.mxu0 %v88
  %112 = vmatmul.bf16.gmra.mxu0 %v54
  %v113 = vpop.f32.mrf.mxu0
  %v114 = vadd.f32 0.0, %v113
  %v115 = vpop.f32.mrf.mxu0
  %v116 = vadd.f32 0.0, %v115
  %117 = vdwg.mxu0
  %v118 = vadd.f32 %v30, %v114
  %v119 = vadd.f32 %v31, %v116
  %vm120 = vcmask 261120
  %121 = vst.msk [vmem:[#allocation2] sm:$0xff] %vm120, %v118
  %122 = vst.msk [vmem:[#allocation2 + $0x8] sm:$0xff] %vm120, %v119
  // Predicated region
  $region30: #{bert_prompt_forward.16} parent=0 // pred_check
    %p123 = pneg %p23
  $region31: #{bert_prompt_forward.16} parent=0 // pred_check_branch
    %125 = sbr.rel (%p123) target = $region33
  $region32: #{bert_prompt_forward.16} parent=0 // pred_region
    %v126 = vld [vmem:[#allocation2] sm:$0xff]
    %v127 = vld [vmem:[#allocation2 + $0x8] sm:$0xff]
    %v128 = vld [vmem:[%s2] sm:$0x1]
    %v130 = vperm.slane %v128, 0
    %v132 = vadd.f32 %v126, %v130
    %v133 = vadd.f32 %v127, %v130
    %v134 = vld [vmem:[%s3] sm:$0xf]
    %v135 = vld [vmem:[%s3 + $0x4] sm:$0xf]
    %v136 = vunpack.c.l.bf16 %v134
    %v137 = vunpack.c.l.bf16 %v135
    %v138 = vadd.f32 %v132, %v136
    %v139 = vadd.f32 %v133, %v137
    %v140 = vsel %vm120, %v138, 0.0
    %141 = vadd.xlane.f32.xlu0 %v140
    %v142 = vpop.xlane.xlu0 %141
    %v143 = vsel %vm120, %v139, 0.0
    %144 = vadd.xlane.f32.xlu0 %v143
    %v145 = vpop.xlane.xlu0 %144
    %v146 = vrcp.pop 32.0
    %v147 = vmul.f32 32.0, %v146
    %v148 = vsub.f32 1.0, %v147
    %v149 = vmul.f32 %v146, %v148
    %v150 = vadd.f32 %v146, %v149
    %vm151 = vweird.f32 %v146
    %v152 = vsel %vm151, %v146, %v150
    %v153 = vmul.f32 %v142, %v152
    %v154 = vmul.f32 %v145, %v152
    %v155 = vsub.f32 %v138, %v153
    %v156 = vsub.f32 %v139, %v154
    %v157 = vmul.f32 %v155, %v155
    %v158 = vmul.f32 %v156, %v156
    %v159 = vsel %vm120, %v157, 0.0
    %160 = vadd.xlane.f32.xlu0 %v159
    %v161 = vpop.xlane.xlu0 %160
    %v162 = vsel %vm120, %v158, 0.0
    %163 = vadd.xlane.f32.xlu0 %v162
    %v164 = vpop.xlane.xlu0 %163
    %v165 = vmul.f32 %v161, %v152
    %v166 = vmul.f32 %v164, %v152
    %v167 = vadd.f32 %v165, 1e-12
    %v168 = vadd.f32 %v166, 1e-12
    %v169 = vrsqrt.pop %v167
    %v170 = vmul.f32 %v169, %v167
    %v171 = vmul.f32 %v170, %v169
    %v172 = vmul.f32 0.5, %v171
    %v173 = vsub.f32 1.5, %v172
    %v174 = vmul.f32 %v169, %v173
    %vm175 = vweird.f32 %v167
    %vm176 = vweird.f32 %v169
    %vm177 = vmor %vm175, %vm176
    %v178 = vsel %vm177, %v169, %v174
    %v179 = vrsqrt.pop %v168
    %v180 = vmul.f32 %v179, %v168
    %v181 = vmul.f32 %v180, %v179
    %v182 = vmul.f32 0.5, %v181
    %v183 = vsub.f32 1.5, %v182
    %v184 = vmul.f32 %v179, %v183
    %vm185 = vweird.f32 %v168
    %vm186 = vweird.f32 %v179
    %vm187 = vmor %vm185, %vm186
    %v188 = vsel %vm187, %v179, %v184
    %v189 = vmul.f32 %v155, %v178
    %v190 = vmul.f32 %v156, %v188
    %v191 = vld [vmem:[%s4] sm:$0x1]
    %v193 = vperm.slane %v191, 0
    %v195 = vmul.f32 %v189, %v193
    %v196 = vmul.f32 %v190, %v193
    %v197 = vld [vmem:[%s5] sm:$0x1]
    %v199 = vperm.slane %v197, 0
    %v201 = vadd.f32 %v195, %v199
    %v202 = vadd.f32 %v196, %v199
    %v203 = vpack.c.bf16 %v201, %v201
    %v204 = vpack.c.bf16 %v202, %v202
    %vm205 = vcmask 257024
    %206 = vst.msk [vmem:[%s6] sm:$0xf] %vm205, %v203
    %207 = vst.msk [vmem:[%s6 + $0x4] sm:$0xf] %vm205, %v204
  $region33: #{bert_prompt_forward.16} parent=0 // pred_fallthru
    _
  // Predicated region
  $region34: #{bert_prompt_forward.16} parent=0 // pred_check
    _
  $region35: #{bert_prompt_forward.16} parent=0 // pred_check_branch
    %209 = sbr.rel (0) target = $region37
  $region36: #{bert_prompt_forward.16} parent=0 // pred_region
    _
  $region37: #{bert_prompt_forward.16} parent=0 // pred_fallthru
    _
  // Predicated region
  $region38: #{bert_prompt_forward.16} parent=0 // pred_check
    _
  $region39: #{bert_prompt_forward.16} parent=0 // pred_check_branch
    %211 = sbr.rel (0) target = $region41
  $region40: #{bert_prompt_forward.16} parent=0 // pred_region
    _
  $region41: #{bert_prompt_forward.16} parent=0 // pred_fallthru
    _

// kernel: bert_prompt_forward.17
$region0: #{bert_prompt_forward.17}
  #allocation0 [shape = 'u32[]', space=smem, size = 0x4, offset = 0x4, fixed_abs, tag = 'smem constant byte address 0x4 - core index']
  #allocation1 [shape = 'u32[72,128]{1,0:T(1,128)}', space=vmem, size = 0x9000, scoped, tag = 'internal scratch']
  #allocation2 [shape = 'f32[16,128]{1,0:T(8,128)}', space=vmem, size = 0x2000, scoped, tag = 'scratch operand']
  %s0 = inlined_call_operand.vmem [shape: bf16[16,128], index: 0, kind: input, shape index: {}]
  %s1 = inlined_call_operand.vmem [shape: bf16[128,128], index: 1, kind: input, shape index: {}]
  %s2 = inlined_call_operand.vmem [shape: f32[1,128], index: 2, kind: input, shape index: {}]
  %s3 = inlined_call_operand.vmem [shape: bf16[16,128], index: 3, kind: output, shape index: {}]
  %s4 = sld [smem:[#allocation0]]
  $region30: #{bert_prompt_forward.17} parent=0
    _
  %s6 = ssub.s32 1, %s4
  %s7 = scalar_select 0, %s6, %s4
  // Predicated region
  $region2: #{bert_prompt_forward.17} parent=0 // pred_check
    _
  $region3: #{bert_prompt_forward.17} parent=0 // pred_check_branch
    %9 = sbr.rel (0) target = $region5
  $region4: #{bert_prompt_forward.17} parent=0 // pred_region
    _
  $region5: #{bert_prompt_forward.17} parent=0 // pred_fallthru
    _
  // Predicated region
  $region6: #{bert_prompt_forward.17} parent=0 // pred_check
    _
  $region7: #{bert_prompt_forward.17} parent=0 // pred_check_branch
    %11 = sbr.rel (0) target = $region9
  $region8: #{bert_prompt_forward.17} parent=0 // pred_region
    _
  $region9: #{bert_prompt_forward.17} parent=0 // pred_fallthru
    _
  // Predicated region
  $region10: #{bert_prompt_forward.17} parent=0 // pred_check
    _
  $region11: #{bert_prompt_forward.17} parent=0 // pred_check_branch
    %13 = sbr.rel (0) target = $region13
  $region12: #{bert_prompt_forward.17} parent=0 // pred_region
    _
  $region13: #{bert_prompt_forward.17} parent=0 // pred_fallthru
    _
  %p14 = scmp.eq.s32.totalorder 0, 0
  // Predicated region
  $region14: #{bert_prompt_forward.17} parent=0 // pred_check
    %p15 = pneg %p14
  $region15: #{bert_prompt_forward.17} parent=0 // pred_check_branch
    %17 = sbr.rel (%p15) target = $region17
  $region16: #{bert_prompt_forward.17} parent=0 // pred_region
    %18 = vst [vmem:[#allocation2] sm:$0xff] 0.0
    %19 = vst [vmem:[#allocation2 + $0x8] sm:$0xff] 0.0
  $region17: #{bert_prompt_forward.17} parent=0 // pred_fallthru
    _
  %v20 = vld [vmem:[#allocation2] sm:$0xff]
  %v21 = vld [vmem:[#allocation2 + $0x8] sm:$0xff]
  %v22 = vld [vmem:[%s0] sm:$0xf]
  %v23 = vld [vmem:[%s0 + $0x4] sm:$0xf]
  %v24 = vld [vmem:[%s1] sm:$0xf]
  %v25 = vld [vmem:[%s1 + $0x4] sm:$0xf]
  %v26 = vld [vmem:[%s1 + $0x8] sm:$0xf]
  %v27 = vld [vmem:[%s1 + $0xc] sm:$0xf]
  %v28 = vld [vmem:[%s1 + $0x10] sm:$0xf]
  %v29 = vld [vmem:[%s1 + $0x14] sm:$0xf]
  %v30 = vld [vmem:[%s1 + $0x18] sm:$0xf]
  %v31 = vld [vmem:[%s1 + $0x1c] sm:$0xf]
  %v32 = vld [vmem:[%s1 + $0x20] sm:$0xf]
  %v33 = vld [vmem:[%s1 + $0x24] sm:$0xf]
  %v34 = vld [vmem:[%s1 + $0x28] sm:$0xf]
  %v35 = vld [vmem:[%s1 + $0x2c] sm:$0xf]
  %v36 = vld [vmem:[%s1 + $0x30] sm:$0xf]
  %v37 = vld [vmem:[%s1 + $0x34] sm:$0xf]
  %v38 = vld [vmem:[%s1 + $0x38] sm:$0xf]
  %v39 = vld [vmem:[%s1 + $0x3c] sm:$0xf]
  %v42 = vunpack.c.l.b16 %v22
  %v43 = vunpack.c.l.b16 %v23
  %v44 = vpack.c.b16 %v43, %v42
  %v62 = vunpack.c.l.b16 %v24
  %v63 = vunpack.c.l.b16 %v25
  %v64 = vunpack.c.l.b16 %v26
  %v65 = vunpack.c.l.b16 %v27
  %v66 = vunpack.c.l.b16 %v28
  %v67 = vunpack.c.l.b16 %v29
  %v68 = vunpack.c.l.b16 %v30
  %v69 = vunpack.c.l.b16 %v31
  %v70 = vunpack.c.l.b16 %v32
  %v71 = vunpack.c.l.b16 %v33
  %v72 = vunpack.c.l.b16 %v34
  %v73 = vunpack.c.l.b16 %v35
  %v74 = vunpack.c.l.b16 %v36
  %v75 = vunpack.c.l.b16 %v37
  %v76 = vunpack.c.l.b16 %v38
  %v77 = vunpack.c.l.b16 %v39
  %v78 = vpack.c.b16 %v63, %v62
  %v79 = vpack.c.b16 %v65, %v64
  %v80 = vpack.c.b16 %v67, %v66
  %v81 = vpack.c.b16 %v69, %v68
  %v82 = vpack.c.b16 %v71, %v70
  %v83 = vpack.c.b16 %v73, %v72
  %v84 = vpack.c.b16 %v75, %v74
  %v85 = vpack.c.b16 %v77, %v76
  %94 = vmatpush.bf16.msra.mxu0 %v85
  %95 = vmatpush.bf16.msra.mxu0 %v84
  %96 = vmatpush.bf16.msra.mxu0 %v83
  %97 = vmatpush.bf16.msra.mxu0 %v82
  %98 = vmatpush.bf16.msra.mxu0 %v81
  %99 = vmatpush.bf16.msra.mxu0 %v80
  %100 = vmatpush.bf16.msra.mxu0 %v79
  %101 = vmatpush.bf16.msra.mxu0 %v78
  %102 = vmatmul.bf16.gmra.mxu0 %v44
  %v103 = vpop.f32.mrf.mxu0
  %v104 = vadd.f32 0.0, %v103
  %v105 = vpop.f32.mrf.mxu0
  %v106 = vadd.f32 0.0, %v105
  %107 = vdwg.mxu0
  %v108 = vadd.f32 %v20, %v104
  %v109 = vadd.f32 %v21, %v106
  %110 = vst [vmem:[#allocation2] sm:$0xff] %v108
  %111 = vst [vmem:[#allocation2 + $0x8] sm:$0xff] %v109
  // Predicated region
  $region18: #{bert_prompt_forward.17} parent=0 // pred_check
    %p112 = pneg %p14
  $region19: #{bert_prompt_forward.17} parent=0 // pred_check_branch
    %114 = sbr.rel (%p112) target = $region21
  $region20: #{bert_prompt_forward.17} parent=0 // pred_region
    %v115 = vld [vmem:[#allocation2] sm:$0xff]
    %v116 = vld [vmem:[#allocation2 + $0x8] sm:$0xff]
    %v117 = vld [vmem:[%s2] sm:$0x1]
    %v119 = vperm.slane %v117, 0
    %v121 = vadd.f32 %v115, %v119
    %v122 = vadd.f32 %v116, %v119
    %v123 = vmul.f32 %v121, 0.5
    %v124 = vmul.f32 %v122, 0.5
    %v125 = vmul.f32 %v121, 0.044715
    %v126 = vmul.f32 %v122, 0.044715
    %v127 = vmul.f32 %v125, %v121
    %v128 = vmul.f32 %v126, %v122
    %v129 = vmul.f32 %v127, %v121
    %v130 = vmul.f32 %v128, %v122
    %v131 = vadd.f32 %v121, %v129
    %v132 = vadd.f32 %v122, %v130
    %v133 = vmul.f32 %v131, 0.7978846
    %v134 = vmul.f32 %v132, 0.7978846
    %v135 = vtanh.pop %v133
    %v136 = vtanh.pop %v134
    %v137 = vadd.f32 %v135, 1.0
    %v138 = vadd.f32 %v136, 1.0
    %v139 = vmul.f32 %v123, %v137
    %v140 = vmul.f32 %v124, %v138
    %v141 = vpack.c.bf16 %v139, %v139
    %v142 = vpack.c.bf16 %v140, %v140
    %143 = vst [vmem:[%s3] sm:$0xf] %v141
    %144 = vst [vmem:[%s3 + $0x4] sm:$0xf] %v142
  $region21: #{bert_prompt_forward.17} parent=0 // pred_fallthru
    _
  // Predicated region
  $region22: #{bert_prompt_forward.17} parent=0 // pred_check
    _
  $region23: #{bert_prompt_forward.17} parent=0 // pred_check_branch
    %146 = sbr.rel (0) target = $region25
  $region24: #{bert_prompt_forward.17} parent=0 // pred_region
    _
  $region25: #{bert_prompt_forward.17} parent=0 // pred_fallthru
    _
  // Predicated region
  $region26: #{bert_prompt_forward.17} parent=0 // pred_check
    _
  $region27: #{bert_prompt_forward.17} parent=0 // pred_check_branch
    %148 = sbr.rel (0) target = $region29
  $region28: #{bert_prompt_forward.17} parent=0 // pred_region
    _
  $region29: #{bert_prompt_forward.17} parent=0 // pred_fallthru
    _

// kernel: bert_prompt_forward.25
$region0: #{bert_prompt_forward.25}
  #allocation0 [shape = 'u32[]', space=smem, size = 0x4, offset = 0x4, fixed_abs, tag = 'smem constant byte address 0x4 - core index']
  #allocation1 [shape = 'u32[72,128]{1,0:T(1,128)}', space=vmem, size = 0x9000, scoped, tag = 'internal scratch']
  #allocation2 [shape = 'f32[8,128]{1,0:T(8,128)}', space=vmem, size = 0x1000, scoped, tag = 'scratch operand']
  %s0 = inlined_call_operand.vmem [shape: bf16[8,128], index: 0, kind: input, shape index: {}]
  %s1 = inlined_call_operand.vmem [shape: bf16[128,128], index: 1, kind: input, shape index: {}]
  %s2 = inlined_call_operand.vmem [shape: f32[1,128], index: 2, kind: input, shape index: {}]
  %s3 = inlined_call_operand.vmem [shape: f32[8,128], index: 3, kind: output, shape index: {}]
  %s4 = sld [smem:[#allocation0]]
  $region30: #{bert_prompt_forward.25} parent=0
    _
  %s6 = ssub.s32 1, %s4
  %s7 = scalar_select 0, %s6, %s4
  // Predicated region
  $region2: #{bert_prompt_forward.25} parent=0 // pred_check
    _
  $region3: #{bert_prompt_forward.25} parent=0 // pred_check_branch
    %9 = sbr.rel (0) target = $region5
  $region4: #{bert_prompt_forward.25} parent=0 // pred_region
    _
  $region5: #{bert_prompt_forward.25} parent=0 // pred_fallthru
    _
  // Predicated region
  $region6: #{bert_prompt_forward.25} parent=0 // pred_check
    _
  $region7: #{bert_prompt_forward.25} parent=0 // pred_check_branch
    %11 = sbr.rel (0) target = $region9
  $region8: #{bert_prompt_forward.25} parent=0 // pred_region
    _
  $region9: #{bert_prompt_forward.25} parent=0 // pred_fallthru
    _
  // Predicated region
  $region10: #{bert_prompt_forward.25} parent=0 // pred_check
    _
  $region11: #{bert_prompt_forward.25} parent=0 // pred_check_branch
    %13 = sbr.rel (0) target = $region13
  $region12: #{bert_prompt_forward.25} parent=0 // pred_region
    _
  $region13: #{bert_prompt_forward.25} parent=0 // pred_fallthru
    _
  %p14 = scmp.eq.s32.totalorder 0, 0
  // Predicated region
  $region14: #{bert_prompt_forward.25} parent=0 // pred_check
    %p15 = pneg %p14
  $region15: #{bert_prompt_forward.25} parent=0 // pred_check_branch
    %17 = sbr.rel (%p15) target = $region17
  $region16: #{bert_prompt_forward.25} parent=0 // pred_region
    %18 = vst [vmem:[#allocation2] sm:$0xff] 0.0
  $region17: #{bert_prompt_forward.25} parent=0 // pred_fallthru
    _
  %v19 = vld [vmem:[#allocation2] sm:$0xff]
  %v20 = vld [vmem:[%s0] sm:$0xf]
  %v21 = vld [vmem:[%s1] sm:$0xf]
  %v22 = vld [vmem:[%s1 + $0x4] sm:$0xf]
  %v23 = vld [vmem:[%s1 + $0x8] sm:$0xf]
  %v24 = vld [vmem:[%s1 + $0xc] sm:$0xf]
  %v25 = vld [vmem:[%s1 + $0x10] sm:$0xf]
  %v26 = vld [vmem:[%s1 + $0x14] sm:$0xf]
  %v27 = vld [vmem:[%s1 + $0x18] sm:$0xf]
  %v28 = vld [vmem:[%s1 + $0x1c] sm:$0xf]
  %v29 = vld [vmem:[%s1 + $0x20] sm:$0xf]
  %v30 = vld [vmem:[%s1 + $0x24] sm:$0xf]
  %v31 = vld [vmem:[%s1 + $0x28] sm:$0xf]
  %v32 = vld [vmem:[%s1 + $0x2c] sm:$0xf]
  %v33 = vld [vmem:[%s1 + $0x30] sm:$0xf]
  %v34 = vld [vmem:[%s1 + $0x34] sm:$0xf]
  %v35 = vld [vmem:[%s1 + $0x38] sm:$0xf]
  %v36 = vld [vmem:[%s1 + $0x3c] sm:$0xf]
  %v53 = vunpack.c.l.b16 %v21
  %v54 = vunpack.c.l.b16 %v22
  %v55 = vunpack.c.l.b16 %v23
  %v56 = vunpack.c.l.b16 %v24
  %v57 = vunpack.c.l.b16 %v25
  %v58 = vunpack.c.l.b16 %v26
  %v59 = vunpack.c.l.b16 %v27
  %v60 = vunpack.c.l.b16 %v28
  %v61 = vunpack.c.l.b16 %v29
  %v62 = vunpack.c.l.b16 %v30
  %v63 = vunpack.c.l.b16 %v31
  %v64 = vunpack.c.l.b16 %v32
  %v65 = vunpack.c.l.b16 %v33
  %v66 = vunpack.c.l.b16 %v34
  %v67 = vunpack.c.l.b16 %v35
  %v68 = vunpack.c.l.b16 %v36
  %v69 = vpack.c.b16 %v54, %v53
  %v70 = vpack.c.b16 %v56, %v55
  %v71 = vpack.c.b16 %v58, %v57
  %v72 = vpack.c.b16 %v60, %v59
  %v73 = vpack.c.b16 %v62, %v61
  %v74 = vpack.c.b16 %v64, %v63
  %v75 = vpack.c.b16 %v66, %v65
  %v76 = vpack.c.b16 %v68, %v67
  %85 = vmatpush.bf16.msra.mxu0 %v76
  %86 = vmatpush.bf16.msra.mxu0 %v75
  %87 = vmatpush.bf16.msra.mxu0 %v74
  %88 = vmatpush.bf16.msra.mxu0 %v73
  %89 = vmatpush.bf16.msra.mxu0 %v72
  %90 = vmatpush.bf16.msra.mxu0 %v71
  %91 = vmatpush.bf16.msra.mxu0 %v70
  %92 = vmatpush.bf16.msra.mxu0 %v69
  %93 = vmatmul.bf16.gmra.mxu0 %v20
  %v94 = vpop.f32.mrf.mxu0
  %v95 = vadd.f32 0.0, %v94
  %v96 = vpop.f32.mrf.mxu0
  %97 = vdwg.mxu0
  %v98 = vadd.f32 %v19, %v95
  %99 = vst [vmem:[#allocation2] sm:$0xff] %v98
  // Predicated region
  $region18: #{bert_prompt_forward.25} parent=0 // pred_check
    %p100 = pneg %p14
  $region19: #{bert_prompt_forward.25} parent=0 // pred_check_branch
    %102 = sbr.rel (%p100) target = $region21
  $region20: #{bert_prompt_forward.25} parent=0 // pred_region
    %v103 = vld [vmem:[#allocation2] sm:$0xff]
    %v104 = vld [vmem:[%s2] sm:$0x1]
    %v106 = vperm.slane %v104, 0
    %v108 = vadd.f32 %v103, %v106
    %109 = vst [vmem:[%s3] sm:$0xff] %v108
  $region21: #{bert_prompt_forward.25} parent=0 // pred_fallthru
    _
  // Predicated region
  $region22: #{bert_prompt_forward.25} parent=0 // pred_check
    _
  $region23: #{bert_prompt_forward.25} parent=0 // pred_check_branch
    %111 = sbr.rel (0) target = $region25
  $region24: #{bert_prompt_forward.25} parent=0 // pred_region
    _
  $region25: #{bert_prompt_forward.25} parent=0 // pred_fallthru
    _
  // Predicated region
  $region26: #{bert_prompt_forward.25} parent=0 // pred_check
    _
  $region27: #{bert_prompt_forward.25} parent=0 // pred_check_branch
    %113 = sbr.rel (0) target = $region29
  $region28: #{bert_prompt_forward.25} parent=0 // pred_region
    _
  $region29: #{bert_prompt_forward.25} parent=0 // pred_fallthru
    _

// kernel: bert_prompt_forward.24
$region0: #{bert_prompt_forward.24}
  #allocation0 [shape = 'u32[]', space=smem, size = 0x4, offset = 0x4, fixed_abs, tag = 'smem constant byte address 0x4 - core index']
  #allocation1 [shape = 'u32[72,128]{1,0:T(1,128)}', space=vmem, size = 0x9000, scoped, tag = 'internal scratch']
  #allocation2 [shape = 'f32[8,32]{1,0:T(8,128)}', space=vmem, size = 0x1000, scoped, tag = 'scratch operand']
  %s0 = inlined_call_operand.vmem [shape: bf16[8,128], index: 0, kind: input, shape index: {}]
  %s1 = inlined_call_operand.vmem [shape: bf16[128,32], index: 1, kind: input, shape index: {}]
  %s2 = inlined_call_operand.vmem [shape: f32[1,32], index: 2, kind: input, shape index: {}]
  %s3 = inlined_call_operand.vmem [shape: f32[1,32], index: 3, kind: input, shape index: {}]
  %s4 = inlined_call_operand.vmem [shape: f32[1,32], index: 4, kind: input, shape index: {}]
  %s5 = inlined_call_operand.vmem [shape: bf16[8,32], index: 5, kind: output, shape index: {}]
  %s6 = sld [smem:[#allocation0]]
  $region38: #{bert_prompt_forward.24} parent=0
    _
  %s8 = ssub.s32 1, %s6
  %s9 = scalar_select 0, %s8, %s6
  // Predicated region
  $region2: #{bert_prompt_forward.24} parent=0 // pred_check
    _
  $region3: #{bert_prompt_forward.24} parent=0 // pred_check_branch
    %11 = sbr.rel (0) target = $region5
  $region4: #{bert_prompt_forward.24} parent=0 // pred_region
    _
  $region5: #{bert_prompt_forward.24} parent=0 // pred_fallthru
    _
  // Predicated region
  $region6: #{bert_prompt_forward.24} parent=0 // pred_check
    _
  $region7: #{bert_prompt_forward.24} parent=0 // pred_check_branch
    %13 = sbr.rel (0) target = $region9
  $region8: #{bert_prompt_forward.24} parent=0 // pred_region
    _
  $region9: #{bert_prompt_forward.24} parent=0 // pred_fallthru
    _
  // Predicated region
  $region10: #{bert_prompt_forward.24} parent=0 // pred_check
    _
  $region11: #{bert_prompt_forward.24} parent=0 // pred_check_branch
    %15 = sbr.rel (0) target = $region13
  $region12: #{bert_prompt_forward.24} parent=0 // pred_region
    _
  $region13: #{bert_prompt_forward.24} parent=0 // pred_fallthru
    _
  // Predicated region
  $region14: #{bert_prompt_forward.24} parent=0 // pred_check
    _
  $region15: #{bert_prompt_forward.24} parent=0 // pred_check_branch
    %17 = sbr.rel (0) target = $region17
  $region16: #{bert_prompt_forward.24} parent=0 // pred_region
    _
  $region17: #{bert_prompt_forward.24} parent=0 // pred_fallthru
    _
  // Predicated region
  $region18: #{bert_prompt_forward.24} parent=0 // pred_check
    _
  $region19: #{bert_prompt_forward.24} parent=0 // pred_check_branch
    %19 = sbr.rel (0) target = $region21
  $region20: #{bert_prompt_forward.24} parent=0 // pred_region
    _
  $region21: #{bert_prompt_forward.24} parent=0 // pred_fallthru
    _
  %p20 = scmp.eq.s32.totalorder 0, 0
  // Predicated region
  $region22: #{bert_prompt_forward.24} parent=0 // pred_check
    %p21 = pneg %p20
  $region23: #{bert_prompt_forward.24} parent=0 // pred_check_branch
    %23 = sbr.rel (%p21) target = $region25
  $region24: #{bert_prompt_forward.24} parent=0 // pred_region
    %vm24 = vcmask 261120
    %25 = vst.msk [vmem:[#allocation2] sm:$0xff] %vm24, 0.0
  $region25: #{bert_prompt_forward.24} parent=0 // pred_fallthru
    _
  %v26 = vld [vmem:[#allocation2] sm:$0xff]
  %v27 = vld [vmem:[%s0] sm:$0xf]
  %v28 = vld [vmem:[%s1] sm:$0xf]
  %v29 = vld [vmem:[%s1 + $0x4] sm:$0xf]
  %v30 = vld [vmem:[%s1 + $0x8] sm:$0xf]
  %v31 = vld [vmem:[%s1 + $0xc] sm:$0xf]
  %v32 = vld [vmem:[%s1 + $0x10] sm:$0xf]
  %v33 = vld [vmem:[%s1 + $0x14] sm:$0xf]
  %v34 = vld [vmem:[%s1 + $0x18] sm:$0xf]
  %v35 = vld [vmem:[%s1 + $0x1c] sm:$0xf]
  %v36 = vld [vmem:[%s1 + $0x20] sm:$0xf]
  %v37 = vld [vmem:[%s1 + $0x24] sm:$0xf]
  %v38 = vld [vmem:[%s1 + $0x28] sm:$0xf]
  %v39 = vld [vmem:[%s1 + $0x2c] sm:$0xf]
  %v40 = vld [vmem:[%s1 + $0x30] sm:$0xf]
  %v41 = vld [vmem:[%s1 + $0x34] sm:$0xf]
  %v42 = vld [vmem:[%s1 + $0x38] sm:$0xf]
  %v43 = vld [vmem:[%s1 + $0x3c] sm:$0xf]
  %v60 = vunpack.c.l.b16 %v28
  %v61 = vunpack.c.l.b16 %v29
  %v62 = vunpack.c.l.b16 %v30
  %v63 = vunpack.c.l.b16 %v31
  %v64 = vunpack.c.l.b16 %v32
  %v65 = vunpack.c.l.b16 %v33
  %v66 = vunpack.c.l.b16 %v34
  %v67 = vunpack.c.l.b16 %v35
  %v68 = vunpack.c.l.b16 %v36
  %v69 = vunpack.c.l.b16 %v37
  %v70 = vunpack.c.l.b16 %v38
  %v71 = vunpack.c.l.b16 %v39
  %v72 = vunpack.c.l.b16 %v40
  %v73 = vunpack.c.l.b16 %v41
  %v74 = vunpack.c.l.b16 %v42
  %v75 = vunpack.c.l.b16 %v43
  %v76 = vpack.c.b16 %v61, %v60
  %v77 = vpack.c.b16 %v63, %v62
  %v78 = vpack.c.b16 %v65, %v64
  %v79 = vpack.c.b16 %v67, %v66
  %v80 = vpack.c.b16 %v69, %v68
  %v81 = vpack.c.b16 %v71, %v70
  %v82 = vpack.c.b16 %v73, %v72
  %v83 = vpack.c.b16 %v75, %v74
  %92 = vmatpush.bf16.msra.mxu0 %v83
  %93 = vmatpush.bf16.msra.mxu0 %v82
  %94 = vmatpush.bf16.msra.mxu0 %v81
  %95 = vmatpush.bf16.msra.mxu0 %v80
  %96 = vmatpush.bf16.msra.mxu0 %v79
  %97 = vmatpush.bf16.msra.mxu0 %v78
  %98 = vmatpush.bf16.msra.mxu0 %v77
  %99 = vmatpush.bf16.msra.mxu0 %v76
  %100 = vmatmul.bf16.gmra.mxu0 %v27
  %v101 = vpop.f32.mrf.mxu0
  %v102 = vadd.f32 0.0, %v101
  %v103 = vpop.f32.mrf.mxu0
  %104 = vdwg.mxu0
  %v105 = vadd.f32 %v26, %v102
  %vm106 = vcmask 261120
  %107 = vst.msk [vmem:[#allocation2] sm:$0xff] %vm106, %v105
  // Predicated region
  $region26: #{bert_prompt_forward.24} parent=0 // pred_check
    %p108 = pneg %p20
  $region27: #{bert_prompt_forward.24} parent=0 // pred_check_branch
    %110 = sbr.rel (%p108) target = $region29
  $region28: #{bert_prompt_forward.24} parent=0 // pred_region
    %v111 = vld [vmem:[#allocation2] sm:$0xff]
    %v112 = vld [vmem:[%s2] sm:$0x1]
    %v114 = vperm.slane %v112, 0
    %v116 = vadd.f32 %v111, %v114
    %v117 = vmul.f32 %v116, 0.5
    %v118 = vmul.f32 %v116, 0.044715
    %v119 = vmul.f32 %v118, %v116
    %v120 = vmul.f32 %v119, %v116
    %v121 = vadd.f32 %v116, %v120
    %v122 = vmul.f32 %v121, 0.7978846
    %v123 = vtanh.pop %v122
    %v124 = vadd.f32 %v123, 1.0
    %v125 = vmul.f32 %v117, %v124
    %v126 = vsel %vm106, %v125, 0.0
    %127 = vadd.xlane.f32.xlu0 %v126
    %v128 = vpop.xlane.xlu0 %127
    %v129 = vrcp.pop 32.0
    %v130 = vmul.f32 32.0, %v129
    %v131 = vsub.f32 1.0, %v130
    %v132 = vmul.f32 %v129, %v131
    %v133 = vadd.f32 %v129, %v132
    %vm134 = vweird.f32 %v129
    %v135 = vsel %vm134, %v129, %v133
    %v136 = vmul.f32 %v128, %v135
    %v137 = vsub.f32 %v125, %v136
    %v138 = vmul.f32 %v137, %v137
    %v139 = vsel %vm106, %v138, 0.0
    %140 = vadd.xlane.f32.xlu0 %v139
    %v141 = vpop.xlane.xlu0 %140
    %v142 = vmul.f32 %v141, %v135
    %v143 = vadd.f32 %v142, 1e-12
    %v144 = vrsqrt.pop %v143
    %v145 = vmul.f32 %v144, %v143
    %v146 = vmul.f32 %v145, %v144
    %v147 = vmul.f32 0.5, %v146
    %v148 = vsub.f32 1.5, %v147
    %v149 = vmul.f32 %v144, %v148
    %vm150 = vweird.f32 %v143
    %vm151 = vweird.f32 %v144
    %vm152 = vmor %vm150, %vm151
    %v153 = vsel %vm152, %v144, %v149
    %v154 = vmul.f32 %v137, %v153
    %v155 = vld [vmem:[%s3] sm:$0x1]
    %v157 = vperm.slane %v155, 0
    %v159 = vmul.f32 %v154, %v157
    %v160 = vld [vmem:[%s4] sm:$0x1]
    %v162 = vperm.slane %v160, 0
    %v164 = vadd.f32 %v159, %v162
    %v165 = vpack.c.bf16 %v164, %v164
    %vm166 = vcmask 257024
    %167 = vst.msk [vmem:[%s5] sm:$0xf] %vm166, %v165
  $region29: #{bert_prompt_forward.24} parent=0 // pred_fallthru
    _
  // Predicated region
  $region30: #{bert_prompt_forward.24} parent=0 // pred_check
    _
  $region31: #{bert_prompt_forward.24} parent=0 // pred_check_branch
    %169 = sbr.rel (0) target = $region33
  $region32: #{bert_prompt_forward.24} parent=0 // pred_region
    _
  $region33: #{bert_prompt_forward.24} parent=0 // pred_fallthru
    _
  // Predicated region
  $region34: #{bert_prompt_forward.24} parent=0 // pred_check
    _
  $region35: #{bert_prompt_forward.24} parent=0 // pred_check_branch
    %171 = sbr.rel (0) target = $region37
  $region36: #{bert_prompt_forward.24} parent=0 // pred_region
    _
  $region37: #{bert_prompt_forward.24} parent=0 // pred_fallthru
    _

</llo_original>
